<compile_context>
chip_gen: v7x
topology: tpu7x:2x2x1
jax: 0.10.0
libtpu: 0.0.40
codegen_flags: <defaults>
</compile_context>

<pallas_src>
import numpy as np

import jax
import jax.numpy as jnp
from jax.experimental import pallas as pl
from jax.experimental.pallas import tpu as pltpu


# ----------------------------------------------------------------------------
# Kernel
# ----------------------------------------------------------------------------
def _frn_kernel(hsi_ref, msi_ref, xs_ref, wst_ref, wsum_ref,
                wg_ref, vg_ref, w_half_ref, b_half_ref,
                out_ref, table_ref):
    """One (batch, token-tile) grid step.

    Layouts (tokens on the 128-lane axis):
      hsi_ref   (1, C_hsi9, tL)       raw HSI_Patch channels
      msi_ref   (1, 9, C_msi9, tL)    raw MSI_Patch2 channels per neighbour j
      xs_ref    (1, C_x, n_pix)       x at the <=16 grid_sample stencil pixels
      wst_ref   (n_pix, 9)            bilinear stencil weights per offset
      wsum_ref  (1, 9)                total in-range bilinear weight per offset
      wg_ref    (C_msi9, C_hsi9)      fused attention bilinear form
      vg_ref    (C_msi9, 1)           fused HSI-embedding-bias term
      w_half_ref (C_half, C_x)        Conv_half weight,  b_half_ref (C_half, 1)
      out_ref   (1, C_half, tL)
      table_ref VMEM scratch (C_half, 9), carried across token tiles of a batch
    """
    f32 = jnp.float32
    t = pl.program_id(1)

    # ---- once per batch element: the 9-entry grid_sample lookup table -------
    # table[c, j] = sum_p  Conv_half(x)[c, pix_p] * stencil_w[j, p]
    #            = (W_half @ (x_stencil @ wst))[c, j] + b_half[c] * wsum[j]
    @pl.when(t == 0)
    def _():
        xs = xs_ref[0]                                                  # (C_x, n_pix)
        sampled = jnp.dot(xs, wst_ref[...],
                          preferred_element_type=f32)                   # (C_x, 9)
        table_ref[...] = (jnp.dot(w_half_ref[...], sampled,
                                  preferred_element_type=f32)
                          + b_half_ref[...] * wsum_ref[...])            # (C_half, 9)

    # ---- fused attention query for this token tile --------------------------
    h = hsi_ref[0]                                                      # (C_hsi9, tL)
    g = jnp.dot(wg_ref[...], h, preferred_element_type=f32) + vg_ref[...]   # (C_msi9, tL)

    # ---- neighbourhood argmax, one offset j = 0..8 at a time ----------------
    # softmax / scale / per-token-constant terms are dropped (argmax-invariant);
    # strict `>` keeps the first maximal index (torch.max tie-breaking).
    best = None
    fd = None
    for j in range(9):
        m_j = msi_ref[0, j]                                             # (C_msi9, tL)
        s_j = jnp.sum(g * m_j, axis=0, keepdims=True)                   # (1, tL)
        if j == 0:
            best = s_j
            fd = jnp.zeros_like(s_j, dtype=jnp.int32)
        else:
            better = s_j > best
            best = jnp.where(better, s_j, best)
            fd = jnp.where(better, jnp.int32(j), fd)

    # ---- grid_sample == per-token lookup into the 9-entry table -------------
    table = table_ref[...]                                              # (C_half, 9)
    out = jnp.where(fd == 0, table[:, 0:1], 0.0)                        # (C_half, tL)
    for j in range(1, 9):
        out = jnp.where(fd == j, table[:, j:j + 1], out)
    out_ref[0] = out


# ----------------------------------------------------------------------------
# Static grid_sample geometry (pure numpy, depends only on H, W)
# ----------------------------------------------------------------------------
def _grid_sample_stencil(H, W):
    """Bilinear weights of F.grid_sample(mode='bilinear', padding_mode='zeros',
    align_corners=False) for the 9 possible grid values produced by fd:
        Grid[..., 0] (x) = fd // 3 - 1 ,   Grid[..., 1] (y) = fd % 3 - 1.
    Returns (wst (9, n_pix), wsum (9,), pix_idx (n_pix,)) where only the
    <=16 pixels with nonzero weight are kept."""
    ws = np.zeros((9, H, W), np.float32)
    for j in range(9):
        gx = float(j // 3 - 1)
        gy = float(j % 3 - 1)
        ix = ((gx + 1.0) * W - 1.0) * 0.5
        iy = ((gy + 1.0) * H - 1.0) * 0.5
        ix0 = int(np.floor(ix))
        iy0 = int(np.floor(iy))
        wx1 = ix - ix0
        wy1 = iy - iy0
        for yy, wy in ((iy0, 1.0 - wy1), (iy0 + 1, wy1)):
            if not 0 <= yy < H:
                continue   # zero padding
            for xx, wx in ((ix0, 1.0 - wx1), (ix0 + 1, wx1)):
                if not 0 <= xx < W:
                    continue
                ws[j, yy, xx] += np.float32(wy * wx)
    ws = ws.reshape(9, H * W)
    pix_idx = np.nonzero(ws.max(axis=0) > 0)[0]
    if pix_idx.size == 0:
        pix_idx = np.array([0], dtype=np.int64)
    return ws[:, pix_idx], ws.sum(axis=1), pix_idx


# ----------------------------------------------------------------------------
# Parameters (JAX (in, out) convention; full qkv created then sliced for
# parity with nn.Linear(dim, 3*dim, bias=False))
# ----------------------------------------------------------------------------
def make_params(key, in_ch_hsi, in_ch_msi, dim=256):
    ks = jax.random.split(key, 8)

    def init(k, shape, s):
        return jax.random.normal(k, shape, jnp.float32) * s

    w_hsi = init(ks[0], (in_ch_hsi * 9, dim), 0.05)        # Conv_HSI_Embedding (1x1)
    b_hsi = init(ks[1], (1, dim), 0.05)
    w_msi = init(ks[2], (in_ch_msi * 9, dim), 0.05)        # Conv_MSI_Embedding (1x1)
    b_msi = init(ks[3], (1, dim), 0.05)
    w_half = init(ks[4], (in_ch_hsi * 2, in_ch_hsi), 0.1)  # Conv_half (1x1)
    b_half = init(ks[5], (1, in_ch_hsi), 0.1)
    wqkv1 = init(ks[6], (dim, 3 * dim), 0.02)              # qkv_1 (no bias)
    wqkv2 = init(ks[7], (dim, 3 * dim), 0.02)              # qkv_2 (no bias)
    wq1 = wqkv1[:, :dim]                                   # q slice of qkv_1
    wk2 = wqkv2[:, dim:2 * dim]                            # k slice of qkv_2
    return (w_hsi, b_hsi, w_msi, b_msi, w_half, b_half, wq1, wk2)


def _pick_token_tile(L):
    if L % 128 != 0:
        return L                       # tiny demo sizes: single tile
    t = min(L, 1024)
    while L % t:
        t //= 2
    return t


# ----------------------------------------------------------------------------
# Forward wrapper
# ----------------------------------------------------------------------------
def fine_registration_forward(x, y, hsi_patch, msi_patch2, params, *, token_tile=None):
    """FineRegistrationNetwork forward (NCHW in / NCHW out)."""
    del y  # unused by the reference forward pass
    w_hsi, b_hsi, w_msi, b_msi, w_half, b_half, wq1, wk2 = params

    B, Cx, H, W = x.shape
    assert H == W, "reference reshapes the grid with x.shape[2] twice (assumes H == W)"
    L = H * W
    c_hsi9 = hsi_patch.shape[1]
    c_msi9 = msi_patch2.shape[1]
    assert hsi_patch.shape == (B, c_hsi9, H, W)
    assert msi_patch2.shape == (B, c_msi9, 3 * H, 3 * W), \
        "MSI_Patch2 must hold 9 pixels per HSI pixel"
    c_half = w_half.shape[1]

    # ---- tokens-in-lanes activation layouts (hsi is a pure reshape; msi gets
    # one XLA transpose to pull the 9 neighbour offsets off the lane axis) ----
    hsi_flat = hsi_patch.reshape(B, c_hsi9, L)                               # (B, C_hsi9, L)
    msi_flat = msi_patch2.reshape(B, c_msi9, L, 9).transpose(0, 3, 1, 2)     # (B, 9, C_msi9, L)

    # ---- host-side weight fusion (tiny: O(dim * channels), weights only) ----
    A = w_hsi @ wq1                                 # (C_hsi9, dim)   Conv_HSI ∘ q-proj
    a = b_hsi @ wq1                                 # (1, dim)
    Bm = w_msi @ wk2                                # (C_msi9, dim)   Conv_MSI ∘ k-proj
    wg = Bm @ A.T                                   # (C_msi9, C_hsi9)
    vg = Bm @ a.T                                   # (C_msi9, 1)
    w_half_t = w_half.T                             # (C_half, C_x)
    b_half_c = b_half.reshape(c_half, 1)

    # ---- grid_sample stencil (static geometry) + tiny pixel gather ----------
    wst_np, wsum_np, pix_idx = _grid_sample_stencil(H, W)
    n_pix = int(pix_idx.shape[0])
    wst = jnp.asarray(wst_np.T)                     # (n_pix, 9)
    wsum = jnp.asarray(wsum_np.reshape(1, 9))       # (1, 9)
    x_stencil = x.reshape(B, Cx, L)[:, :, pix_idx]  # (B, C_x, n_pix)

    tL = _pick_token_tile(L) if token_tile is None else token_tile
    assert L % tL == 0 and (tL == L or tL % 128 == 0)
    nT = L // tL

    out = pl.pallas_call(
        _frn_kernel,
        out_shape=jax.ShapeDtypeStruct((B, c_half, L), jnp.float32),
        grid=(B, nT),
        in_specs=[
            pl.BlockSpec((1, c_hsi9, tL), lambda b, t: (b, 0, t)),
            pl.BlockSpec((1, 9, c_msi9, tL), lambda b, t: (b, 0, 0, t)),
            pl.BlockSpec((1, Cx, n_pix), lambda b, t: (b, 0, 0)),
            pl.BlockSpec((n_pix, 9), lambda b, t: (0, 0)),
            pl.BlockSpec((1, 9), lambda b, t: (0, 0)),
            pl.BlockSpec((c_msi9, c_hsi9), lambda b, t: (0, 0)),
            pl.BlockSpec((c_msi9, 1), lambda b, t: (0, 0)),
            pl.BlockSpec((c_half, Cx), lambda b, t: (0, 0)),
            pl.BlockSpec((c_half, 1), lambda b, t: (0, 0)),
        ],
        out_specs=pl.BlockSpec((1, c_half, tL), lambda b, t: (b, 0, t)),
        scratch_shapes=[pltpu.VMEM((c_half, 9), jnp.float32)],
        compiler_params=pltpu.CompilerParams(
            # batch axis megacore-parallel; token axis stays "arbitrary" since
            # the 9-entry table is computed at t == 0 and carried in scratch
            # across the token tiles of each batch element.
            dimension_semantics=("parallel", "arbitrary"),
        ),
    )(hsi_flat, msi_flat, x_stencil, wst, wsum, wg, vg, w_half_t, b_half_c)

    # (B, C_half, L) is already channel-first: straight reshape to NCHW.
    return out.reshape(B, c_half, H, W)


# ----------------------------------------------------------------------------
# Pure-JAX reference (literal translation of the PyTorch forward) for checking
# ----------------------------------------------------------------------------
def _grid_sample_bilinear_ref(img, grid):
    """F.grid_sample: bilinear, padding_mode='zeros', align_corners=False."""
    B, C, H, W = img.shape
    gx, gy = grid[..., 0], grid[..., 1]
    ix = ((gx + 1.0) * W - 1.0) * 0.5
    iy = ((gy + 1.0) * H - 1.0) * 0.5
    ix0 = jnp.floor(ix)
    iy0 = jnp.floor(iy)
    wx1 = ix - ix0
    wy1 = iy - iy0

    def tap(iy_, ix_, w):
        valid = (ix_ >= 0) & (ix_ <= W - 1) & (iy_ >= 0) & (iy_ <= H - 1)
        ixc = jnp.clip(ix_, 0, W - 1).astype(jnp.int32)
        iyc = jnp.clip(iy_, 0, H - 1).astype(jnp.int32)
        b_idx = jnp.arange(B)[:, None, None]
        v = img[b_idx, :, iyc, ixc]                       # (B, Hg, Wg, C)
        return jnp.where(valid[..., None], v, 0.0) * w[..., None]

    out = (tap(iy0, ix0, (1 - wy1) * (1 - wx1)) + tap(iy0, ix0 + 1, (1 - wy1) * wx1)
           + tap(iy0 + 1, ix0, wy1 * (1 - wx1)) + tap(iy0 + 1, ix0 + 1, wy1 * wx1))
    return out.transpose(0, 3, 1, 2)


def _reference_forward(x, y, hsi_patch, msi_patch2, params):
    del y
    w_hsi, b_hsi, w_msi, b_msi, w_half, b_half, wq1, wk2 = params
    B, Cx, H, W = x.shape
    L = H * W
    dim = w_hsi.shape[1]
    hsi_emb = jnp.einsum('bchw,cd->bdhw', hsi_patch, w_hsi) + b_hsi.reshape(1, dim, 1, 1)
    msi_emb = jnp.einsum('bchw,cd->bdhw', msi_patch2, w_msi) + b_msi.reshape(1, dim, 1, 1)
    x_half = jnp.einsum('bchw,cd->bdhw', x, w_half) + b_half.reshape(1, -1, 1, 1)
    hsi_tok = hsi_emb.reshape(B, dim, L).transpose(0, 2, 1)            # (B, L, dim)
    msi_tok = msi_emb.reshape(B, dim, 9 * L).transpose(0, 2, 1)        # (B, 9L, dim)
    q1 = hsi_tok @ wq1
    k2 = msi_tok @ wk2
    k2_2d = k2.transpose(0, 2, 1).reshape(B, dim, L, 9).transpose(0, 2, 1, 3)
    scores = jnp.sum(q1[:, :, :, None] * k2_2d, axis=-2) * (dim ** -0.5)   # (B, L, 9)
    attn = jax.nn.softmax(scores, axis=-1)
    fd = jnp.argmax(attn, axis=-1)                                     # (B, L)
    grid = jnp.stack([(fd // 3 - 1).astype(jnp.float32),
                      (fd % 3 - 1).astype(jnp.float32)], axis=-1).reshape(B, H, W, 2)
    out = _grid_sample_bilinear_ref(x_half, grid)
    return out, scores


# ----------------------------------------------------------------------------
if __name__ == "__main__":
    B = 2
    IN_CH_HSI = 4      # small in_ch_hsi (reference default 31)
    IN_CH_MSI = 3
    HX = WX = 8        # small spatial size (reference default patch_size 128)

    key = jax.random.PRNGKey(0)
    kp, kx, ky, kh, km = jax.random.split(key, 5)
    params = make_params(kp, IN_CH_HSI, IN_CH_MSI, dim=256)

    x = jax.random.normal(kx, (B, 2 * IN_CH_HSI, HX, WX), jnp.float32)
    y = jax.random.normal(ky, (B, IN_CH_MSI, HX, WX), jnp.float32)          # unused by forward
    hsi_patch = jax.random.normal(kh, (B, IN_CH_HSI * 9, HX, WX), jnp.float32)
    msi_patch2 = jax.random.normal(km, (B, IN_CH_MSI * 9, 3 * HX, 3 * WX), jnp.float32)

    out = jax.jit(fine_registration_forward)(x, y, hsi_patch, msi_patch2, params)
    out = jax.block_until_ready(out)

    assert out.shape == (B, IN_CH_HSI, HX, WX), out.shape
    assert out.dtype == jnp.float32
    assert bool(jnp.all(jnp.isfinite(out)))

    # Pure-JAX reference check. Tokens whose 9-way argmax is numerically
    # ambiguous (top-2 score gap below 1e-3 relative) are excluded since any
    # reordering of the float math may legitimately flip them.
    out_ref, scores = _reference_forward(x, y, hsi_patch, msi_patch2, params)
    s_sorted = jnp.sort(scores, axis=-1)
    gap = s_sorted[..., -1] - s_sorted[..., -2]
    robust = (gap > 1e-3 * (1.0 + jnp.abs(s_sorted[..., -1]))).reshape(B, 1, HX, WX)
    err = float(jnp.max(jnp.abs(jnp.where(robust, out - out_ref, 0.0))))
    tol = 1e-3 * (1.0 + float(jnp.max(jnp.abs(out_ref))))
    assert err < tol, (err, tol)

    print("KERNEL_OK")
</pallas_src>

<mosaic_0001>
module attributes {stable_mosaic.version = 11 : i64} {
  func.func @_frn_kernel(%arg0: i32, %arg1: i32, %arg2: memref<1x36x64xf32, #tpu.memory_space<vmem>>, %arg3: memref<1x9x27x64xf32, #tpu.memory_space<vmem>>, %arg4: memref<1x8x16xf32, #tpu.memory_space<vmem>>, %arg5: memref<16x9xf32, #tpu.memory_space<vmem>>, %arg6: memref<1x9xf32, #tpu.memory_space<vmem>>, %arg7: memref<27x36xf32, #tpu.memory_space<vmem>>, %arg8: memref<27x1xf32, #tpu.memory_space<vmem>>, %arg9: memref<4x8xf32, #tpu.memory_space<vmem>>, %arg10: memref<4x1xf32, #tpu.memory_space<vmem>>, %arg11: memref<1x4x64xf32, #tpu.memory_space<vmem>>, %arg12: memref<4x9xf32, #tpu.memory_space<vmem>>) attributes {dimension_semantics = [#tpu.dimension_semantics<parallel>, #tpu.dimension_semantics<arbitrary>], iteration_bounds = array<i64: 2, 1>, scalar_prefetch = 0 : i64, scratch_operands = 1 : i64, tpu.core_type = #tpu.core_type<tc>, window_params = [{transform_indices = @transform_0, window_bounds = array<i64: 1, 36, 64>}, {transform_indices = @transform_1, window_bounds = array<i64: 1, 9, 27, 64>}, {transform_indices = @transform_2, window_bounds = array<i64: 1, 8, 16>}, {pipeline_mode = #tpu.pipeline_mode<synchronous>, transform_indices = @transform_3, window_bounds = array<i64: 16, 9>}, {pipeline_mode = #tpu.pipeline_mode<synchronous>, transform_indices = @transform_4, window_bounds = array<i64: 1, 9>}, {pipeline_mode = #tpu.pipeline_mode<synchronous>, transform_indices = @transform_5, window_bounds = array<i64: 27, 36>}, {pipeline_mode = #tpu.pipeline_mode<synchronous>, transform_indices = @transform_6, window_bounds = array<i64: 27, 1>}, {pipeline_mode = #tpu.pipeline_mode<synchronous>, transform_indices = @transform_7, window_bounds = array<i64: 4, 8>}, {pipeline_mode = #tpu.pipeline_mode<synchronous>, transform_indices = @transform_8, window_bounds = array<i64: 4, 1>}, {transform_indices = @transform_9, window_bounds = array<i64: 1, 4, 64>}]} {
    %c0_i32 = arith.constant 0 : i32
    %0 = arith.cmpi eq, %arg1, %c0_i32 : i32
    %1 = arith.extui %0 : i1 to i32
    %c0_i32_0 = arith.constant 0 : i32
    %2 = arith.cmpi ne, %1, %c0_i32_0 : i32
    scf.if %2 {
      %c0_60 = arith.constant 0 : index
      %c0_61 = arith.constant 0 : index
      %c0_62 = arith.constant 0 : index
      %164 = vector.load %arg4[%c0_60, %c0_61, %c0_62] : memref<1x8x16xf32, #tpu.memory_space<vmem>>, vector<1x8x16xf32>
      %165 = vector.shape_cast %164 : vector<1x8x16xf32> to vector<8x16xf32>
      %c0_63 = arith.constant 0 : index
      %c0_64 = arith.constant 0 : index
      %166 = vector.load %arg5[%c0_63, %c0_64] : memref<16x9xf32, #tpu.memory_space<vmem>>, vector<16x9xf32>
      %cst_65 = arith.constant dense<0.000000e+00> : vector<8x9xf32>
      %167 = tpu.matmul %165, %166, %cst_65 {dimension_numbers = #tpu.dot_dimension_numbers<[1], [0], [0], [1], [0, 0, 1, 1], [], []>} : vector<8x16xf32>, vector<16x9xf32>, vector<8x9xf32> -> vector<8x9xf32>
      %c0_66 = arith.constant 0 : index
      %c0_67 = arith.constant 0 : index
      %168 = vector.load %arg9[%c0_66, %c0_67] : memref<4x8xf32, #tpu.memory_space<vmem>>, vector<4x8xf32>
      %cst_68 = arith.constant dense<0.000000e+00> : vector<4x9xf32>
      %169 = tpu.matmul %168, %167, %cst_68 {dimension_numbers = #tpu.dot_dimension_numbers<[1], [0], [0], [1], [0, 0, 1, 1], [], []>} : vector<4x8xf32>, vector<8x9xf32>, vector<4x9xf32> -> vector<4x9xf32>
      %c0_69 = arith.constant 0 : index
      %c0_70 = arith.constant 0 : index
      %170 = vector.load %arg10[%c0_69, %c0_70] : memref<4x1xf32, #tpu.memory_space<vmem>>, vector<4x1xf32>
      %c0_71 = arith.constant 0 : index
      %c0_72 = arith.constant 0 : index
      %171 = vector.load %arg6[%c0_71, %c0_72] : memref<1x9xf32, #tpu.memory_space<vmem>>, vector<1x9xf32>
      %172 = vector.broadcast %170 : vector<4x1xf32> to vector<4x9xf32>
      %173 = vector.broadcast %171 : vector<1x9xf32> to vector<4x9xf32>
      %174 = arith.mulf %172, %173 : vector<4x9xf32>
      %175 = arith.addf %169, %174 : vector<4x9xf32>
      %c0_73 = arith.constant 0 : index
      %c0_74 = arith.constant 0 : index
      %176 = vector.load %arg12[%c0_73, %c0_74] : memref<4x9xf32, #tpu.memory_space<vmem>>, vector<4x9xf32>
      tpu.vector_store %arg12[%c0_73, %c0_74], %175 {strides = array<i32>} : memref<4x9xf32, #tpu.memory_space<vmem>>, vector<4x9xf32>,
    } else {
    }
    %c0 = arith.constant 0 : index
    %c0_1 = arith.constant 0 : index
    %c0_2 = arith.constant 0 : index
    %3 = vector.load %arg2[%c0, %c0_1, %c0_2] : memref<1x36x64xf32, #tpu.memory_space<vmem>>, vector<1x36x64xf32>
    %4 = vector.shape_cast %3 : vector<1x36x64xf32> to vector<36x64xf32>
    %c0_3 = arith.constant 0 : index
    %c0_4 = arith.constant 0 : index
    %5 = vector.load %arg7[%c0_3, %c0_4] : memref<27x36xf32, #tpu.memory_space<vmem>>, vector<27x36xf32>
    %cst = arith.constant dense<0.000000e+00> : vector<27x64xf32>
    %6 = tpu.matmul %5, %4, %cst {dimension_numbers = #tpu.dot_dimension_numbers<[1], [0], [0], [1], [0, 0, 1, 1], [], []>} : vector<27x36xf32>, vector<36x64xf32>, vector<27x64xf32> -> vector<27x64xf32>
    %c0_5 = arith.constant 0 : index
    %c0_6 = arith.constant 0 : index
    %7 = vector.load %arg8[%c0_5, %c0_6] : memref<27x1xf32, #tpu.memory_space<vmem>>, vector<27x1xf32>
    %8 = vector.broadcast %7 : vector<27x1xf32> to vector<27x64xf32>
    %9 = arith.addf %6, %8 : vector<27x64xf32>
    %c0_7 = arith.constant 0 : index
    %c0_8 = arith.constant 0 : index
    %c0_9 = arith.constant 0 : index
    %c0_10 = arith.constant 0 : index
    %10 = vector.load %arg3[%c0_7, %c0_8, %c0_9, %c0_10] : memref<1x9x27x64xf32, #tpu.memory_space<vmem>>, vector<1x1x27x64xf32>
    %11 = vector.shape_cast %10 : vector<1x1x27x64xf32> to vector<27x64xf32>
    %12 = arith.mulf %9, %11 : vector<27x64xf32>
    %cst_11 = arith.constant dense<0.000000e+00> : vector<64xf32>
    %13 = vector.multi_reduction <add>, %12, %cst_11 [0] : vector<27x64xf32> to vector<64xf32>
    %14 = vector.shape_cast %13 : vector<64xf32> to vector<1x64xf32>
    %c0_i32_12 = arith.constant 0 : i32
    %15 = vector.broadcast %c0_i32_12 : i32 to vector<1x64xi32>
    %c0_13 = arith.constant 0 : index
    %c1 = arith.constant 1 : index
    %c0_14 = arith.constant 0 : index
    %c0_15 = arith.constant 0 : index
    %16 = vector.load %arg3[%c0_13, %c1, %c0_14, %c0_15] : memref<1x9x27x64xf32, #tpu.memory_space<vmem>>, vector<1x1x27x64xf32>
    %17 = vector.shape_cast %16 : vector<1x1x27x64xf32> to vector<27x64xf32>
    %18 = arith.mulf %9, %17 : vector<27x64xf32>
    %cst_16 = arith.constant dense<0.000000e+00> : vector<64xf32>
    %19 = vector.multi_reduction <add>, %18, %cst_16 [0] : vector<27x64xf32> to vector<64xf32>
    %20 = vector.shape_cast %19 : vector<64xf32> to vector<1x64xf32>
    %21 = arith.cmpf ogt, %20, %14 : vector<1x64xf32>
    %22 = arith.select %21, %20, %14 : vector<1x64xi1>, vector<1x64xf32>
    %c1_i32 = arith.constant 1 : i32
    %23 = vector.broadcast %c1_i32 : i32 to vector<1x64xi32>
    %24 = arith.select %21, %23, %15 : vector<1x64xi1>, vector<1x64xi32>
    %c0_17 = arith.constant 0 : index
    %c2 = arith.constant 2 : index
    %c0_18 = arith.constant 0 : index
    %c0_19 = arith.constant 0 : index
    %25 = vector.load %arg3[%c0_17, %c2, %c0_18, %c0_19] : memref<1x9x27x64xf32, #tpu.memory_space<vmem>>, vector<1x1x27x64xf32>
    %26 = vector.shape_cast %25 : vector<1x1x27x64xf32> to vector<27x64xf32>
    %27 = arith.mulf %9, %26 : vector<27x64xf32>
    %cst_20 = arith.constant dense<0.000000e+00> : vector<64xf32>
    %28 = vector.multi_reduction <add>, %27, %cst_20 [0] : vector<27x64xf32> to vector<64xf32>
    %29 = vector.shape_cast %28 : vector<64xf32> to vector<1x64xf32>
    %30 = arith.cmpf ogt, %29, %22 : vector<1x64xf32>
    %31 = arith.select %30, %29, %22 : vector<1x64xi1>, vector<1x64xf32>
    %c2_i32 = arith.constant 2 : i32
    %32 = vector.broadcast %c2_i32 : i32 to vector<1x64xi32>
    %33 = arith.select %30, %32, %24 : vector<1x64xi1>, vector<1x64xi32>
    %c0_21 = arith.constant 0 : index
    %c3 = arith.constant 3 : index
    %c0_22 = arith.constant 0 : index
    %c0_23 = arith.constant 0 : index
    %34 = vector.load %arg3[%c0_21, %c3, %c0_22, %c0_23] : memref<1x9x27x64xf32, #tpu.memory_space<vmem>>, vector<1x1x27x64xf32>
    %35 = vector.shape_cast %34 : vector<1x1x27x64xf32> to vector<27x64xf32>
    %36 = arith.mulf %9, %35 : vector<27x64xf32>
    %cst_24 = arith.constant dense<0.000000e+00> : vector<64xf32>
    %37 = vector.multi_reduction <add>, %36, %cst_24 [0] : vector<27x64xf32> to vector<64xf32>
    %38 = vector.shape_cast %37 : vector<64xf32> to vector<1x64xf32>
    %39 = arith.cmpf ogt, %38, %31 : vector<1x64xf32>
    %40 = arith.select %39, %38, %31 : vector<1x64xi1>, vector<1x64xf32>
    %c3_i32 = arith.constant 3 : i32
    %41 = vector.broadcast %c3_i32 : i32 to vector<1x64xi32>
    %42 = arith.select %39, %41, %33 : vector<1x64xi1>, vector<1x64xi32>
    %c0_25 = arith.constant 0 : index
    %c4 = arith.constant 4 : index
    %c0_26 = arith.constant 0 : index
    %c0_27 = arith.constant 0 : index
    %43 = vector.load %arg3[%c0_25, %c4, %c0_26, %c0_27] : memref<1x9x27x64xf32, #tpu.memory_space<vmem>>, vector<1x1x27x64xf32>
    %44 = vector.shape_cast %43 : vector<1x1x27x64xf32> to vector<27x64xf32>
    %45 = arith.mulf %9, %44 : vector<27x64xf32>
    %cst_28 = arith.constant dense<0.000000e+00> : vector<64xf32>
    %46 = vector.multi_reduction <add>, %45, %cst_28 [0] : vector<27x64xf32> to vector<64xf32>
    %47 = vector.shape_cast %46 : vector<64xf32> to vector<1x64xf32>
    %48 = arith.cmpf ogt, %47, %40 : vector<1x64xf32>
    %49 = arith.select %48, %47, %40 : vector<1x64xi1>, vector<1x64xf32>
    %c4_i32 = arith.constant 4 : i32
    %50 = vector.broadcast %c4_i32 : i32 to vector<1x64xi32>
    %51 = arith.select %48, %50, %42 : vector<1x64xi1>, vector<1x64xi32>
    %c0_29 = arith.constant 0 : index
    %c5 = arith.constant 5 : index
    %c0_30 = arith.constant 0 : index
    %c0_31 = arith.constant 0 : index
    %52 = vector.load %arg3[%c0_29, %c5, %c0_30, %c0_31] : memref<1x9x27x64xf32, #tpu.memory_space<vmem>>, vector<1x1x27x64xf32>
    %53 = vector.shape_cast %52 : vector<1x1x27x64xf32> to vector<27x64xf32>
    %54 = arith.mulf %9, %53 : vector<27x64xf32>
    %cst_32 = arith.constant dense<0.000000e+00> : vector<64xf32>
    %55 = vector.multi_reduction <add>, %54, %cst_32 [0] : vector<27x64xf32> to vector<64xf32>
    %56 = vector.shape_cast %55 : vector<64xf32> to vector<1x64xf32>
    %57 = arith.cmpf ogt, %56, %49 : vector<1x64xf32>
    %58 = arith.select %57, %56, %49 : vector<1x64xi1>, vector<1x64xf32>
    %c5_i32 = arith.constant 5 : i32
    %59 = vector.broadcast %c5_i32 : i32 to vector<1x64xi32>
    %60 = arith.select %57, %59, %51 : vector<1x64xi1>, vector<1x64xi32>
    %c0_33 = arith.constant 0 : index
    %c6 = arith.constant 6 : index
    %c0_34 = arith.constant 0 : index
    %c0_35 = arith.constant 0 : index
    %61 = vector.load %arg3[%c0_33, %c6, %c0_34, %c0_35] : memref<1x9x27x64xf32, #tpu.memory_space<vmem>>, vector<1x1x27x64xf32>
    %62 = vector.shape_cast %61 : vector<1x1x27x64xf32> to vector<27x64xf32>
    %63 = arith.mulf %9, %62 : vector<27x64xf32>
    %cst_36 = arith.constant dense<0.000000e+00> : vector<64xf32>
    %64 = vector.multi_reduction <add>, %63, %cst_36 [0] : vector<27x64xf32> to vector<64xf32>
    %65 = vector.shape_cast %64 : vector<64xf32> to vector<1x64xf32>
    %66 = arith.cmpf ogt, %65, %58 : vector<1x64xf32>
    %67 = arith.select %66, %65, %58 : vector<1x64xi1>, vector<1x64xf32>
    %c6_i32 = arith.constant 6 : i32
    %68 = vector.broadcast %c6_i32 : i32 to vector<1x64xi32>
    %69 = arith.select %66, %68, %60 : vector<1x64xi1>, vector<1x64xi32>
    %c0_37 = arith.constant 0 : index
    %c7 = arith.constant 7 : index
    %c0_38 = arith.constant 0 : index
    %c0_39 = arith.constant 0 : index
    %70 = vector.load %arg3[%c0_37, %c7, %c0_38, %c0_39] : memref<1x9x27x64xf32, #tpu.memory_space<vmem>>, vector<1x1x27x64xf32>
    %71 = vector.shape_cast %70 : vector<1x1x27x64xf32> to vector<27x64xf32>
    %72 = arith.mulf %9, %71 : vector<27x64xf32>
    %cst_40 = arith.constant dense<0.000000e+00> : vector<64xf32>
    %73 = vector.multi_reduction <add>, %72, %cst_40 [0] : vector<27x64xf32> to vector<64xf32>
    %74 = vector.shape_cast %73 : vector<64xf32> to vector<1x64xf32>
    %75 = arith.cmpf ogt, %74, %67 : vector<1x64xf32>
    %76 = arith.select %75, %74, %67 : vector<1x64xi1>, vector<1x64xf32>
    %c7_i32 = arith.constant 7 : i32
    %77 = vector.broadcast %c7_i32 : i32 to vector<1x64xi32>
    %78 = arith.select %75, %77, %69 : vector<1x64xi1>, vector<1x64xi32>
    %c0_41 = arith.constant 0 : index
    %c8 = arith.constant 8 : index
    %c0_42 = arith.constant 0 : index
    %c0_43 = arith.constant 0 : index
    %79 = vector.load %arg3[%c0_41, %c8, %c0_42, %c0_43] : memref<1x9x27x64xf32, #tpu.memory_space<vmem>>, vector<1x1x27x64xf32>
    %80 = vector.shape_cast %79 : vector<1x1x27x64xf32> to vector<27x64xf32>
    %81 = arith.mulf %9, %80 : vector<27x64xf32>
    %cst_44 = arith.constant dense<0.000000e+00> : vector<64xf32>
    %82 = vector.multi_reduction <add>, %81, %cst_44 [0] : vector<27x64xf32> to vector<64xf32>
    %83 = vector.shape_cast %82 : vector<64xf32> to vector<1x64xf32>
    %84 = arith.cmpf ogt, %83, %76 : vector<1x64xf32>
    %c8_i32 = arith.constant 8 : i32
    %85 = vector.broadcast %c8_i32 : i32 to vector<1x64xi32>
    %86 = arith.select %84, %85, %78 : vector<1x64xi1>, vector<1x64xi32>
    %c0_45 = arith.constant 0 : index
    %c0_46 = arith.constant 0 : index
    %87 = vector.load %arg12[%c0_45, %c0_46] : memref<4x9xf32, #tpu.memory_space<vmem>>, vector<4x9xf32>
    %c0_i32_47 = arith.constant 0 : i32
    %88 = vector.broadcast %c0_i32_47 : i32 to vector<1x64xi32>
    %89 = arith.cmpi eq, %86, %88 : vector<1x64xi32>
    %90 = vector.extract_strided_slice %87 {offsets = [0, 0], sizes = [4, 1], strides = [1, 1]} : vector<4x9xf32> to vector<4x1xf32>
    %cst_48 = arith.constant 0.000000e+00 : f32
    %91 = vector.shape_cast %89 : vector<1x64xi1> to vector<1x64xi1>
    %92 = vector.broadcast %91 : vector<1x64xi1> to vector<4x64xi1>
    %93 = vector.shape_cast %90 : vector<4x1xf32> to vector<4x1xf32>
    %94 = vector.broadcast %93 : vector<4x1xf32> to vector<4x64xf32>
    %95 = vector.broadcast %cst_48 : f32 to vector<4x64xf32>
    %96 = arith.select %92, %94, %95 : vector<4x64xi1>, vector<4x64xf32>
    %c1_i32_49 = arith.constant 1 : i32
    %97 = vector.broadcast %c1_i32_49 : i32 to vector<1x64xi32>
    %98 = arith.cmpi eq, %86, %97 : vector<1x64xi32>
    %99 = vector.extract_strided_slice %87 {offsets = [0, 1], sizes = [4, 1], strides = [1, 1]} : vector<4x9xf32> to vector<4x1xf32>
    %100 = vector.shape_cast %98 : vector<1x64xi1> to vector<1x64xi1>
    %101 = vector.broadcast %100 : vector<1x64xi1> to vector<4x64xi1>
    %102 = vector.shape_cast %99 : vector<4x1xf32> to vector<4x1xf32>
    %103 = vector.broadcast %102 : vector<4x1xf32> to vector<4x64xf32>
    %104 = arith.select %101, %103, %96 : vector<4x64xi1>, vector<4x64xf32>
    %c2_i32_50 = arith.constant 2 : i32
    %105 = vector.broadcast %c2_i32_50 : i32 to vector<1x64xi32>
    %106 = arith.cmpi eq, %86, %105 : vector<1x64xi32>
    %107 = vector.extract_strided_slice %87 {offsets = [0, 2], sizes = [4, 1], strides = [1, 1]} : vector<4x9xf32> to vector<4x1xf32>
    %108 = vector.shape_cast %106 : vector<1x64xi1> to vector<1x64xi1>
    %109 = vector.broadcast %108 : vector<1x64xi1> to vector<4x64xi1>
    %110 = vector.shape_cast %107 : vector<4x1xf32> to vector<4x1xf32>
    %111 = vector.broadcast %110 : vector<4x1xf32> to vector<4x64xf32>
    %112 = arith.select %109, %111, %104 : vector<4x64xi1>, vector<4x64xf32>
    %c3_i32_51 = arith.constant 3 : i32
    %113 = vector.broadcast %c3_i32_51 : i32 to vector<1x64xi32>
    %114 = arith.cmpi eq, %86, %113 : vector<1x64xi32>
    %115 = vector.extract_strided_slice %87 {offsets = [0, 3], sizes = [4, 1], strides = [1, 1]} : vector<4x9xf32> to vector<4x1xf32>
    %116 = vector.shape_cast %114 : vector<1x64xi1> to vector<1x64xi1>
    %117 = vector.broadcast %116 : vector<1x64xi1> to vector<4x64xi1>
    %118 = vector.shape_cast %115 : vector<4x1xf32> to vector<4x1xf32>
    %119 = vector.broadcast %118 : vector<4x1xf32> to vector<4x64xf32>
    %120 = arith.select %117, %119, %112 : vector<4x64xi1>, vector<4x64xf32>
    %c4_i32_52 = arith.constant 4 : i32
    %121 = vector.broadcast %c4_i32_52 : i32 to vector<1x64xi32>
    %122 = arith.cmpi eq, %86, %121 : vector<1x64xi32>
    %123 = vector.extract_strided_slice %87 {offsets = [0, 4], sizes = [4, 1], strides = [1, 1]} : vector<4x9xf32> to vector<4x1xf32>
    %124 = vector.shape_cast %122 : vector<1x64xi1> to vector<1x64xi1>
    %125 = vector.broadcast %124 : vector<1x64xi1> to vector<4x64xi1>
    %126 = vector.shape_cast %123 : vector<4x1xf32> to vector<4x1xf32>
    %127 = vector.broadcast %126 : vector<4x1xf32> to vector<4x64xf32>
    %128 = arith.select %125, %127, %120 : vector<4x64xi1>, vector<4x64xf32>
    %c5_i32_53 = arith.constant 5 : i32
    %129 = vector.broadcast %c5_i32_53 : i32 to vector<1x64xi32>
    %130 = arith.cmpi eq, %86, %129 : vector<1x64xi32>
    %131 = vector.extract_strided_slice %87 {offsets = [0, 5], sizes = [4, 1], strides = [1, 1]} : vector<4x9xf32> to vector<4x1xf32>
    %132 = vector.shape_cast %130 : vector<1x64xi1> to vector<1x64xi1>
    %133 = vector.broadcast %132 : vector<1x64xi1> to vector<4x64xi1>
    %134 = vector.shape_cast %131 : vector<4x1xf32> to vector<4x1xf32>
    %135 = vector.broadcast %134 : vector<4x1xf32> to vector<4x64xf32>
    %136 = arith.select %133, %135, %128 : vector<4x64xi1>, vector<4x64xf32>
    %c6_i32_54 = arith.constant 6 : i32
    %137 = vector.broadcast %c6_i32_54 : i32 to vector<1x64xi32>
    %138 = arith.cmpi eq, %86, %137 : vector<1x64xi32>
    %139 = vector.extract_strided_slice %87 {offsets = [0, 6], sizes = [4, 1], strides = [1, 1]} : vector<4x9xf32> to vector<4x1xf32>
    %140 = vector.shape_cast %138 : vector<1x64xi1> to vector<1x64xi1>
    %141 = vector.broadcast %140 : vector<1x64xi1> to vector<4x64xi1>
    %142 = vector.shape_cast %139 : vector<4x1xf32> to vector<4x1xf32>
    %143 = vector.broadcast %142 : vector<4x1xf32> to vector<4x64xf32>
    %144 = arith.select %141, %143, %136 : vector<4x64xi1>, vector<4x64xf32>
    %c7_i32_55 = arith.constant 7 : i32
    %145 = vector.broadcast %c7_i32_55 : i32 to vector<1x64xi32>
    %146 = arith.cmpi eq, %86, %145 : vector<1x64xi32>
    %147 = vector.extract_strided_slice %87 {offsets = [0, 7], sizes = [4, 1], strides = [1, 1]} : vector<4x9xf32> to vector<4x1xf32>
    %148 = vector.shape_cast %146 : vector<1x64xi1> to vector<1x64xi1>
    %149 = vector.broadcast %148 : vector<1x64xi1> to vector<4x64xi1>
    %150 = vector.shape_cast %147 : vector<4x1xf32> to vector<4x1xf32>
    %151 = vector.broadcast %150 : vector<4x1xf32> to vector<4x64xf32>
    %152 = arith.select %149, %151, %144 : vector<4x64xi1>, vector<4x64xf32>
    %c8_i32_56 = arith.constant 8 : i32
    %153 = vector.broadcast %c8_i32_56 : i32 to vector<1x64xi32>
    %154 = arith.cmpi eq, %86, %153 : vector<1x64xi32>
    %155 = vector.extract_strided_slice %87 {offsets = [0, 8], sizes = [4, 1], strides = [1, 1]} : vector<4x9xf32> to vector<4x1xf32>
    %156 = vector.shape_cast %154 : vector<1x64xi1> to vector<1x64xi1>
    %157 = vector.broadcast %156 : vector<1x64xi1> to vector<4x64xi1>
    %158 = vector.shape_cast %155 : vector<4x1xf32> to vector<4x1xf32>
    %159 = vector.broadcast %158 : vector<4x1xf32> to vector<4x64xf32>
    %160 = arith.select %157, %159, %152 : vector<4x64xi1>, vector<4x64xf32>
    %c0_57 = arith.constant 0 : index
    %c0_58 = arith.constant 0 : index
    %c0_59 = arith.constant 0 : index
    %161 = vector.load %arg11[%c0_57, %c0_58, %c0_59] : memref<1x4x64xf32, #tpu.memory_space<vmem>>, vector<1x4x64xf32>
    %162 = vector.shape_cast %161 : vector<1x4x64xf32> to vector<4x64xf32>
    %163 = vector.shape_cast %160 : vector<4x64xf32> to vector<1x4x64xf32>
    tpu.vector_store %arg11[%c0_57, %c0_58, %c0_59], %163 {strides = array<i32>} : memref<1x4x64xf32, #tpu.memory_space<vmem>>, vector<1x4x64xf32>,
    return
  }
  func.func @transform_0(%arg0: i32, %arg1: i32) -> (i32, i32, i32) {
    %c0_i32 = arith.constant 0 : i32
    %c0_i32_0 = arith.constant 0 : i32
    return %arg0, %c0_i32, %arg1 : i32, i32, i32
  }
  func.func @transform_1(%arg0: i32, %arg1: i32) -> (i32, i32, i32, i32) {
    %c0_i32 = arith.constant 0 : i32
    %c0_i32_0 = arith.constant 0 : i32
    %c0_i32_1 = arith.constant 0 : i32
    return %arg0, %c0_i32, %c0_i32_0, %arg1 : i32, i32, i32, i32
  }
  func.func @transform_2(%arg0: i32, %arg1: i32) -> (i32, i32, i32) {
    %c0_i32 = arith.constant 0 : i32
    %c0_i32_0 = arith.constant 0 : i32
    %c0_i32_1 = arith.constant 0 : i32
    return %arg0, %c0_i32, %c0_i32_0 : i32, i32, i32
  }
  func.func @transform_3(%arg0: i32, %arg1: i32) -> (i32, i32) {
    %c0_i32 = arith.constant 0 : i32
    %c0_i32_0 = arith.constant 0 : i32
    %c0_i32_1 = arith.constant 0 : i32
    return %c0_i32, %c0_i32_0 : i32, i32
  }
  func.func @transform_4(%arg0: i32, %arg1: i32) -> (i32, i32) {
    %c0_i32 = arith.constant 0 : i32
    %c0_i32_0 = arith.constant 0 : i32
    %c0_i32_1 = arith.constant 0 : i32
    return %c0_i32, %c0_i32_0 : i32, i32
  }
  func.func @transform_5(%arg0: i32, %arg1: i32) -> (i32, i32) {
    %c0_i32 = arith.constant 0 : i32
    %c0_i32_0 = arith.constant 0 : i32
    %c0_i32_1 = arith.constant 0 : i32
    return %c0_i32, %c0_i32_0 : i32, i32
  }
  func.func @transform_6(%arg0: i32, %arg1: i32) -> (i32, i32) {
    %c0_i32 = arith.constant 0 : i32
    %c0_i32_0 = arith.constant 0 : i32
    %c0_i32_1 = arith.constant 0 : i32
    return %c0_i32, %c0_i32_0 : i32, i32
  }
  func.func @transform_7(%arg0: i32, %arg1: i32) -> (i32, i32) {
    %c0_i32 = arith.constant 0 : i32
    %c0_i32_0 = arith.constant 0 : i32
    %c0_i32_1 = arith.constant 0 : i32
    return %c0_i32, %c0_i32_0 : i32, i32
  }
  func.func @transform_8(%arg0: i32, %arg1: i32) -> (i32, i32) {
    %c0_i32 = arith.constant 0 : i32
    %c0_i32_0 = arith.constant 0 : i32
    %c0_i32_1 = arith.constant 0 : i32
    return %c0_i32, %c0_i32_0 : i32, i32
  }
  func.func @transform_9(%arg0: i32, %arg1: i32) -> (i32, i32, i32) {
    %c0_i32 = arith.constant 0 : i32
    %c0_i32_0 = arith.constant 0 : i32
    return %arg0, %c0_i32, %arg1 : i32, i32, i32
  }
}

</mosaic_0001>

<llo_original>
// kernel: fine_registration_forward.1
$region0: #{fine_registration_forward.1}
  #allocation0 [shape = 'u32[]', space=smem, size = 0x4, offset = 0x4, fixed_abs, tag = 'smem constant byte address 0x4 - core index']
  #allocation1 [shape = 'u32[144,128]{1,0:T(1,128)}', space=vmem, size = 0x12000, scoped, tag = 'internal scratch']
  #allocation2 [shape = 'f32[4,9]{1,0:T(4,128)}', space=vmem, size = 0x800, scoped, tag = 'scratch operand']
  %s0 = inlined_call_operand.vmem [shape: f32[2,36,64], index: 0, kind: input, shape index: {}]
  %s1 = inlined_call_operand.vmem [shape: f32[2,9,27,64], index: 1, kind: input, shape index: {}]
  %s2 = inlined_call_operand.vmem [shape: f32[2,8,16], index: 2, kind: input, shape index: {}]
  %s3 = inlined_call_operand.vmem [shape: f32[16,9], index: 3, kind: input, shape index: {}]
  %s4 = inlined_call_operand.vmem [shape: f32[1,9], index: 4, kind: input, shape index: {}]
  %s5 = inlined_call_operand.vmem [shape: f32[27,36], index: 5, kind: input, shape index: {}]
  %s6 = inlined_call_operand.vmem [shape: f32[27,1], index: 6, kind: input, shape index: {}]
  %s7 = inlined_call_operand.vmem [shape: f32[4,8], index: 7, kind: input, shape index: {}]
  %s8 = inlined_call_operand.vmem [shape: f32[4,1], index: 8, kind: input, shape index: {}]
  %s9 = inlined_call_operand.vmem [shape: f32[2,4,64], index: 9, kind: output, shape index: {}]
  %s10 = sld [smem:[#allocation0]]
  $region73: #{fine_registration_forward.1} parent=0
    _
  %s12 = ssub.s32 1, %s10
  %s13 = scalar_select 0, %s12, %s10
  loop: start=0, step=1, limit=4
  $region2: #{fine_registration_forward.1} parent=0 // loop_pre_header
    _
  $region3: #{fine_registration_forward.1} parent=0 // loop_header
    %s15 = sphi 0, %s19
    %p16 = scmp.ge.s32.totalorder %s15, 4
    %s22 = sphi 0, %s34
    %s23 = sphi 0, %s30
    %s24 = sphi 0, %s22
    %s25 = sphi 0, %s23
    %s26 = sphi 0, %s24
    %s27 = sphi 0, %s25
    %s39 = sphi 0, %s41
    %s42 = sphi 0, %s39
    %s43 = sphi 0, %s42
    %s59 = sphi 0, %s43
    %s67 = sphi 0, %s69
    %s70 = sphi 0, %s67
    %s71 = sphi 0, %s70
    %s87 = sphi 0, %s71
    %s93 = sphi 0, %s95
    %s96 = sphi 0, %s93
    %s97 = sphi 0, %s96
    %s113 = sphi 0, %s97
    %s117 = sphi 0, %s117
    %s119 = sphi 0, %s117
    %s120 = sphi 0, %s119
    %s134 = sphi 0, %s120
    %s138 = sphi 0, %s138
    %s140 = sphi 0, %s138
    %s141 = sphi 0, %s140
    %s155 = sphi 0, %s141
    %s159 = sphi 0, %s159
    %s161 = sphi 0, %s159
    %s162 = sphi 0, %s161
    %s176 = sphi 0, %s162
    %s180 = sphi 0, %s180
    %s182 = sphi 0, %s180
    %s183 = sphi 0, %s182
    %s197 = sphi 0, %s183
    %s201 = sphi 0, %s201
    %s203 = sphi 0, %s201
    %s204 = sphi 0, %s203
    %s218 = sphi 0, %s204
    %s222 = sphi 0, %s222
    %s224 = sphi 0, %s222
    %s225 = sphi 0, %s224
    %s239 = sphi 0, %s225
    %s247 = sphi 0, %s249
    %s250 = sphi 0, %s247
    %s251 = sphi 0, %s250
    %s267 = sphi 0, %s251
  $region4: #{fine_registration_forward.1} parent=0 // loop_header_branch
    %18 = sbr.rel (%p16) target = $region8
  $region5: #{fine_registration_forward.1} parent=0 // loop_body
    %s20 = ssub.s32 %s15, 1
    %s21 = ssub.s32 %s15, 2
    %s28 = sadd.s32 1, %s23
    %p29 = scmp.ge.s32.totalorder %s28, 1
    %s30 = scalar_select %p29, 0, %s28
    %s31 = sadd.s32 1, %s22
    %s32 = scalar_select %p29, %s31, %s22
    %p33 = scmp.ge.s32.totalorder %s32, 2
    %s34 = scalar_select %p33, 0, %s32
    %s35 = ssub.s32 %s22, %s34
    %s36 = ssub.s32 %s23, %s30
    %s37 = sor.u32 %s35, %s36
    %p38 = scmp.eq.s32.totalorder %s37, 0
    %s40 = sadd.s32 %s39, 1
    %s41 = scalar_select %p38, %s39, %s40
    %p44 = pneg %p38
    %p45 = scmp.eq.s32.totalorder %s15, 1
    %p46 = por %p44, %p45
    %p47 = scmp.ne.s32.totalorder %s39, %s42
    %p48 = scmp.eq.s32.totalorder %s15, 0
    %p49 = por %p47, %p48
    %p50 = scmp.ne.s32.totalorder %s39, %s42
    %p51 = scmp.eq.s32.totalorder %s20, 1
    %p52 = por %p50, %p51
    %p53 = scmp.ne.s32.totalorder %s42, %s43
    %p54 = scmp.eq.s32.totalorder %s20, 0
    %p55 = por %p53, %p54
    %p56 = scmp.ne.s32.totalorder %s42, %s43
    %p57 = scmp.eq.s32.totalorder %s21, 1
    %p58 = por %p56, %p57
    %p60 = scmp.ne.s32.totalorder %s43, %s59
    %p61 = scmp.eq.s32.totalorder %s21, 0
    %p62 = por %p60, %p61
    %s63 = ssub.s32 %s22, %s34
    %s64 = ssub.s32 %s23, %s30
    %s65 = sor.u32 %s63, %s64
    %p66 = scmp.eq.s32.totalorder %s65, 0
    %s68 = sadd.s32 %s67, 1
    %s69 = scalar_select %p66, %s67, %s68
    %p72 = pneg %p66
    %p73 = scmp.eq.s32.totalorder %s15, 1
    %p74 = por %p72, %p73
    %p75 = scmp.ne.s32.totalorder %s67, %s70
    %p76 = scmp.eq.s32.totalorder %s15, 0
    %p77 = por %p75, %p76
    %p78 = scmp.ne.s32.totalorder %s67, %s70
    %p79 = scmp.eq.s32.totalorder %s20, 1
    %p80 = por %p78, %p79
    %p81 = scmp.ne.s32.totalorder %s70, %s71
    %p82 = scmp.eq.s32.totalorder %s20, 0
    %p83 = por %p81, %p82
    %p84 = scmp.ne.s32.totalorder %s70, %s71
    %p85 = scmp.eq.s32.totalorder %s21, 1
    %p86 = por %p84, %p85
    %p88 = scmp.ne.s32.totalorder %s71, %s87
    %p89 = scmp.eq.s32.totalorder %s21, 0
    %p90 = por %p88, %p89
    %s91 = ssub.s32 %s22, %s34
    %p92 = scmp.eq.s32.totalorder %s91, 0
    %s94 = sadd.s32 %s93, 1
    %s95 = scalar_select %p92, %s93, %s94
    %p98 = pneg %p92
    %p99 = scmp.eq.s32.totalorder %s15, 1
    %p100 = por %p98, %p99
    %p101 = scmp.ne.s32.totalorder %s93, %s96
    %p102 = scmp.eq.s32.totalorder %s15, 0
    %p103 = por %p101, %p102
    %p104 = scmp.ne.s32.totalorder %s93, %s96
    %p105 = scmp.eq.s32.totalorder %s20, 1
    %p106 = por %p104, %p105
    %p107 = scmp.ne.s32.totalorder %s96, %s97
    %p108 = scmp.eq.s32.totalorder %s20, 0
    %p109 = por %p107, %p108
    %p110 = scmp.ne.s32.totalorder %s96, %s97
    %p111 = scmp.eq.s32.totalorder %s21, 1
    %p112 = por %p110, %p111
    %p114 = scmp.ne.s32.totalorder %s97, %s113
    %p115 = scmp.eq.s32.totalorder %s21, 0
    %p116 = por %p114, %p115
    %s118 = sadd.s32 %s117, 1
    %p121 = scmp.eq.s32.totalorder %s15, 1
    %p122 = scmp.ne.s32.totalorder %s117, %s119
    %p123 = scmp.eq.s32.totalorder %s15, 0
    %p124 = por %p122, %p123
    %p125 = scmp.ne.s32.totalorder %s117, %s119
    %p126 = scmp.eq.s32.totalorder %s20, 1
    %p127 = por %p125, %p126
    %p128 = scmp.ne.s32.totalorder %s119, %s120
    %p129 = scmp.eq.s32.totalorder %s20, 0
    %p130 = por %p128, %p129
    %p131 = scmp.ne.s32.totalorder %s119, %s120
    %p132 = scmp.eq.s32.totalorder %s21, 1
    %p133 = por %p131, %p132
    %p135 = scmp.ne.s32.totalorder %s120, %s134
    %p136 = scmp.eq.s32.totalorder %s21, 0
    %p137 = por %p135, %p136
    %s139 = sadd.s32 %s138, 1
    %p142 = scmp.eq.s32.totalorder %s15, 1
    %p143 = scmp.ne.s32.totalorder %s138, %s140
    %p144 = scmp.eq.s32.totalorder %s15, 0
    %p145 = por %p143, %p144
    %p146 = scmp.ne.s32.totalorder %s138, %s140
    %p147 = scmp.eq.s32.totalorder %s20, 1
    %p148 = por %p146, %p147
    %p149 = scmp.ne.s32.totalorder %s140, %s141
    %p150 = scmp.eq.s32.totalorder %s20, 0
    %p151 = por %p149, %p150
    %p152 = scmp.ne.s32.totalorder %s140, %s141
    %p153 = scmp.eq.s32.totalorder %s21, 1
    %p154 = por %p152, %p153
    %p156 = scmp.ne.s32.totalorder %s141, %s155
    %p157 = scmp.eq.s32.totalorder %s21, 0
    %p158 = por %p156, %p157
    %s160 = sadd.s32 %s159, 1
    %p163 = scmp.eq.s32.totalorder %s15, 1
    %p164 = scmp.ne.s32.totalorder %s159, %s161
    %p165 = scmp.eq.s32.totalorder %s15, 0
    %p166 = por %p164, %p165
    %p167 = scmp.ne.s32.totalorder %s159, %s161
    %p168 = scmp.eq.s32.totalorder %s20, 1
    %p169 = por %p167, %p168
    %p170 = scmp.ne.s32.totalorder %s161, %s162
    %p171 = scmp.eq.s32.totalorder %s20, 0
    %p172 = por %p170, %p171
    %p173 = scmp.ne.s32.totalorder %s161, %s162
    %p174 = scmp.eq.s32.totalorder %s21, 1
    %p175 = por %p173, %p174
    %p177 = scmp.ne.s32.totalorder %s162, %s176
    %p178 = scmp.eq.s32.totalorder %s21, 0
    %p179 = por %p177, %p178
    %s181 = sadd.s32 %s180, 1
    %p184 = scmp.eq.s32.totalorder %s15, 1
    %p185 = scmp.ne.s32.totalorder %s180, %s182
    %p186 = scmp.eq.s32.totalorder %s15, 0
    %p187 = por %p185, %p186
    %p188 = scmp.ne.s32.totalorder %s180, %s182
    %p189 = scmp.eq.s32.totalorder %s20, 1
    %p190 = por %p188, %p189
    %p191 = scmp.ne.s32.totalorder %s182, %s183
    %p192 = scmp.eq.s32.totalorder %s20, 0
    %p193 = por %p191, %p192
    %p194 = scmp.ne.s32.totalorder %s182, %s183
    %p195 = scmp.eq.s32.totalorder %s21, 1
    %p196 = por %p194, %p195
    %p198 = scmp.ne.s32.totalorder %s183, %s197
    %p199 = scmp.eq.s32.totalorder %s21, 0
    %p200 = por %p198, %p199
    %s202 = sadd.s32 %s201, 1
    %p205 = scmp.eq.s32.totalorder %s15, 1
    %p206 = scmp.ne.s32.totalorder %s201, %s203
    %p207 = scmp.eq.s32.totalorder %s15, 0
    %p208 = por %p206, %p207
    %p209 = scmp.ne.s32.totalorder %s201, %s203
    %p210 = scmp.eq.s32.totalorder %s20, 1
    %p211 = por %p209, %p210
    %p212 = scmp.ne.s32.totalorder %s203, %s204
    %p213 = scmp.eq.s32.totalorder %s20, 0
    %p214 = por %p212, %p213
    %p215 = scmp.ne.s32.totalorder %s203, %s204
    %p216 = scmp.eq.s32.totalorder %s21, 1
    %p217 = por %p215, %p216
    %p219 = scmp.ne.s32.totalorder %s204, %s218
    %p220 = scmp.eq.s32.totalorder %s21, 0
    %p221 = por %p219, %p220
    %s223 = sadd.s32 %s222, 1
    %p226 = scmp.eq.s32.totalorder %s15, 1
    %p227 = scmp.ne.s32.totalorder %s222, %s224
    %p228 = scmp.eq.s32.totalorder %s15, 0
    %p229 = por %p227, %p228
    %p230 = scmp.ne.s32.totalorder %s222, %s224
    %p231 = scmp.eq.s32.totalorder %s20, 1
    %p232 = por %p230, %p231
    %p233 = scmp.ne.s32.totalorder %s224, %s225
    %p234 = scmp.eq.s32.totalorder %s20, 0
    %p235 = por %p233, %p234
    %p236 = scmp.ne.s32.totalorder %s224, %s225
    %p237 = scmp.eq.s32.totalorder %s21, 1
    %p238 = por %p236, %p237
    %p240 = scmp.ne.s32.totalorder %s225, %s239
    %p241 = scmp.eq.s32.totalorder %s21, 0
    %p242 = por %p240, %p241
    %s243 = ssub.s32 %s22, %s34
    %s244 = ssub.s32 %s23, %s30
    %s245 = sor.u32 %s243, %s244
    %p246 = scmp.eq.s32.totalorder %s245, 0
    %s248 = sadd.s32 %s247, 1
    %s249 = scalar_select %p246, %s247, %s248
    %p252 = pneg %p246
    %p253 = scmp.eq.s32.totalorder %s15, 1
    %p254 = por %p252, %p253
    %p255 = scmp.ne.s32.totalorder %s247, %s250
    %p256 = scmp.eq.s32.totalorder %s15, 0
    %p257 = por %p255, %p256
    %p258 = scmp.ne.s32.totalorder %s247, %s250
    %p259 = scmp.eq.s32.totalorder %s20, 1
    %p260 = por %p258, %p259
    %p261 = scmp.ne.s32.totalorder %s250, %s251
    %p262 = scmp.eq.s32.totalorder %s20, 0
    %p263 = por %p261, %p262
    %p264 = scmp.ne.s32.totalorder %s250, %s251
    %p265 = scmp.eq.s32.totalorder %s21, 1
    %p266 = por %p264, %p265
    %p268 = scmp.ne.s32.totalorder %s251, %s267
    %p269 = scmp.eq.s32.totalorder %s21, 0
    %p270 = por %p268, %p269
    %p271 = scmp.le.s32.totalorder 1, %s15
    %p272 = scmp.lt.s32.totalorder %s15, 3
    %p273 = pnand %p271, %p272
    %p274 = pneg %p273
    // Predicated region
    $region9: #{fine_registration_forward.1} parent=5 // pred_check
      _
    $region10: #{fine_registration_forward.1} parent=5 // pred_check_branch
      %276 = sbr.rel (%p273) target = $region12
    $region11: #{fine_registration_forward.1} parent=5 // pred_region
      %s277 = ssub.s32 %s15, 1
      // Predicated region
      $region13: #{fine_registration_forward.1} parent=11 // pred_check
        %p278 = pneg %p130
      $region14: #{fine_registration_forward.1} parent=11 // pred_check_branch
        %280 = sbr.rel (%p278) target = $region16
      $region15: #{fine_registration_forward.1} parent=11 // pred_region
        _
      $region16: #{fine_registration_forward.1} parent=11 // pred_fallthru
        _
      // Predicated region
      $region17: #{fine_registration_forward.1} parent=11 // pred_check
        %p281 = pneg %p151
      $region18: #{fine_registration_forward.1} parent=11 // pred_check_branch
        %283 = sbr.rel (%p281) target = $region20
      $region19: #{fine_registration_forward.1} parent=11 // pred_region
        _
      $region20: #{fine_registration_forward.1} parent=11 // pred_fallthru
        _
      // Predicated region
      $region21: #{fine_registration_forward.1} parent=11 // pred_check
        %p284 = pneg %p172
      $region22: #{fine_registration_forward.1} parent=11 // pred_check_branch
        %286 = sbr.rel (%p284) target = $region24
      $region23: #{fine_registration_forward.1} parent=11 // pred_region
        _
      $region24: #{fine_registration_forward.1} parent=11 // pred_fallthru
        _
      // Predicated region
      $region25: #{fine_registration_forward.1} parent=11 // pred_check
        %p287 = pneg %p193
      $region26: #{fine_registration_forward.1} parent=11 // pred_check_branch
        %289 = sbr.rel (%p287) target = $region28
      $region27: #{fine_registration_forward.1} parent=11 // pred_region
        _
      $region28: #{fine_registration_forward.1} parent=11 // pred_fallthru
        _
      // Predicated region
      $region29: #{fine_registration_forward.1} parent=11 // pred_check
        %p290 = pneg %p214
      $region30: #{fine_registration_forward.1} parent=11 // pred_check_branch
        %292 = sbr.rel (%p290) target = $region32
      $region31: #{fine_registration_forward.1} parent=11 // pred_region
        _
      $region32: #{fine_registration_forward.1} parent=11 // pred_fallthru
        _
      // Predicated region
      $region33: #{fine_registration_forward.1} parent=11 // pred_check
        %p293 = pneg %p235
      $region34: #{fine_registration_forward.1} parent=11 // pred_check_branch
        %295 = sbr.rel (%p293) target = $region36
      $region35: #{fine_registration_forward.1} parent=11 // pred_region
        _
      $region36: #{fine_registration_forward.1} parent=11 // pred_fallthru
        _
    $region12: #{fine_registration_forward.1} parent=5 // pred_fallthru
      _
    %p296 = scmp.lt.s32.totalorder %s15, 2
    // Predicated region
    $region37: #{fine_registration_forward.1} parent=5 // pred_check
      %p297 = pneg %p296
    $region38: #{fine_registration_forward.1} parent=5 // pred_check_branch
      %299 = sbr.rel (%p297) target = $region40
    $region39: #{fine_registration_forward.1} parent=5 // pred_region
      // Predicated region
      $region41: #{fine_registration_forward.1} parent=39 // pred_check
        %p300 = pneg %p49
      $region42: #{fine_registration_forward.1} parent=39 // pred_check_branch
        %302 = sbr.rel (%p300) target = $region44
      $region43: #{fine_registration_forward.1} parent=39 // pred_region
        %p303 = scmp.lt.s32.totalorder %s22, 1
        %s304 = scalar_select %p303, %s22, 1
        %p305 = scmp.lt.s32.totalorder %s23, 0
        %s306 = scalar_select %p305, %s23, 0
        %s307 = smul.addr %s304, 5
        %s308 = sadd.s32 %s306, %s307
        %s309 = smul.addr %s308, 8
        %s310 = scalar_lea.vmem %s0, %s309
      $region44: #{fine_registration_forward.1} parent=39 // pred_fallthru
        _
      // Predicated region
      $region45: #{fine_registration_forward.1} parent=39 // pred_check
        %p311 = pneg %p77
      $region46: #{fine_registration_forward.1} parent=39 // pred_check_branch
        %313 = sbr.rel (%p311) target = $region48
      $region47: #{fine_registration_forward.1} parent=39 // pred_region
        %p314 = scmp.lt.s32.totalorder %s22, 1
        %s315 = scalar_select %p314, %s22, 1
        %p316 = scmp.lt.s32.totalorder %s23, 0
        %s317 = scalar_select %p316, %s23, 0
        %s318 = smul.addr %s315, 36
        %s319 = sadd.s32 %s317, %s318
        %s320 = smul.addr %s319, 8
        %s321 = scalar_lea.vmem %s1, %s320
      $region48: #{fine_registration_forward.1} parent=39 // pred_fallthru
        _
      // Predicated region
      $region49: #{fine_registration_forward.1} parent=39 // pred_check
        %p322 = pneg %p103
      $region50: #{fine_registration_forward.1} parent=39 // pred_check_branch
        %324 = sbr.rel (%p322) target = $region52
      $region51: #{fine_registration_forward.1} parent=39 // pred_region
        %p325 = scmp.lt.s32.totalorder %s22, 1
        %s326 = scalar_select %p325, %s22, 1
        %s327 = smul.addr %s326, 8
        %s328 = scalar_lea.vmem %s2, %s327
      $region52: #{fine_registration_forward.1} parent=39 // pred_fallthru
        _
    $region40: #{fine_registration_forward.1} parent=5 // pred_fallthru
      _
    %p329 = scmp.le.s32.totalorder 1, %s15
    %p330 = scmp.lt.s32.totalorder %s15, 3
    %p331 = pnand %p329, %p330
    %p332 = pneg %p331
    // Predicated region
    $region53: #{fine_registration_forward.1} parent=5 // pred_check
      _
    $region54: #{fine_registration_forward.1} parent=5 // pred_check_branch
      %334 = sbr.rel (%p331) target = $region56
    $region55: #{fine_registration_forward.1} parent=5 // pred_region
      %s335 = ssub.s32 %s15, 1
      %p336 = scmp.lt.s32.totalorder %s24, 1
      %s337 = scalar_select %p336, %s24, 1
      %p338 = scmp.lt.s32.totalorder %s25, 0
      %s339 = scalar_select %p338, %s25, 0
      %s340 = smul.addr %s337, 5
      %s341 = sadd.s32 %s339, %s340
      %s342 = smul.addr %s341, 8
      %s343 = scalar_lea.vmem %s0, %s342
      %p344 = pneg %p55
      %p345 = pneg %p52
      %p346 = scmp.lt.s32.totalorder %s24, 1
      %s347 = scalar_select %p346, %s24, 1
      %p348 = scmp.lt.s32.totalorder %s25, 0
      %s349 = scalar_select %p348, %s25, 0
      %s350 = smul.addr %s347, 36
      %s351 = sadd.s32 %s349, %s350
      %s352 = smul.addr %s351, 8
      %s353 = scalar_lea.vmem %s1, %s352
      %p354 = pneg %p83
      %p355 = pneg %p80
      %p356 = scmp.lt.s32.totalorder %s24, 1
      %s357 = scalar_select %p356, %s24, 1
      %s358 = smul.addr %s357, 8
      %s359 = scalar_lea.vmem %s2, %s358
      %p360 = pneg %p109
      %p361 = pneg %p106
      %p362 = pneg %p130
      %p363 = pneg %p127
      %p364 = pneg %p151
      %p365 = pneg %p148
      %p366 = pneg %p172
      %p367 = pneg %p169
      %p368 = pneg %p193
      %p369 = pneg %p190
      %p370 = pneg %p214
      %p371 = pneg %p211
      %p372 = pneg %p235
      %p373 = pneg %p232
      %p374 = pneg %p263
      %p375 = pneg %p260
      %p376 = scmp.lt.s32.totalorder %s24, 1
      %s377 = scalar_select %p376, %s24, 1
      %p378 = scmp.lt.s32.totalorder %s25, 0
      %s379 = scalar_select %p378, %s25, 0
      %s380 = sadd.s32 %s379, %s377
      %s381 = smul.addr %s380, 4
      %s382 = scalar_lea.vmem %s9, %s381
      %p383 = scmp.lt.s32.totalorder %s24, 1
      %s384 = scalar_select %p383, %s24, 1
      %p385 = scmp.lt.s32.totalorder %s25, 0
      %s386 = scalar_select %p385, %s25, 0
      %s387 = smul.addr %s384, 5
      %s388 = sadd.s32 %s386, %s387
      %s389 = smul.addr %s388, 8
      %s390 = scalar_lea.vmem %s0, %s389
      %p391 = scmp.lt.s32.totalorder %s24, 1
      %s392 = scalar_select %p391, %s24, 1
      %p393 = scmp.lt.s32.totalorder %s25, 0
      %s394 = scalar_select %p393, %s25, 0
      %s395 = smul.addr %s392, 36
      %s396 = sadd.s32 %s394, %s395
      %s397 = smul.addr %s396, 8
      %s398 = scalar_lea.vmem %s1, %s397
      %p399 = scmp.lt.s32.totalorder %s24, 1
      %s400 = scalar_select %p399, %s24, 1
      %s401 = smul.addr %s400, 8
      %s402 = scalar_lea.vmem %s2, %s401
      %p403 = scmp.lt.s32.totalorder %s24, 1
      %s404 = scalar_select %p403, %s24, 1
      %p405 = scmp.lt.s32.totalorder %s25, 0
      %s406 = scalar_select %p405, %s25, 0
      %s407 = sadd.s32 %s406, %s404
      %s408 = smul.addr %s407, 4
      %s409 = scalar_lea.vmem %s9, %s408
      %p410 = scmp.eq.s32.totalorder %s25, 0
      // Predicated region
      $region57: #{fine_registration_forward.1} parent=55 // pred_check
        %p411 = pneg %p410
      $region58: #{fine_registration_forward.1} parent=55 // pred_check_branch
        %413 = sbr.rel (%p411) target = $region60
      $region59: #{fine_registration_forward.1} parent=55 // pred_region
        %v414 = vld [vmem:[%s402] sm:$0xff]
        %v415 = vld [vmem:[%s3] sm:$0xff]
        %v416 = vld [vmem:[%s3 + $0x8] sm:$0xff]
        %vm417 = vcmask 130048
        %v419 = vsel %vm417, %v414, 0
        %421 = vmatprep.subr.mxu0 0.0
        %422 = vmatpush1.msra.mxu0 %v415
        %423 = vmatprep.subr.mxu0 0.0
        %424 = vmatpush1.msra.mxu0 %v416
        %425 = vmatprep.subr.mxu0 0.0
        %426 = vmatpush1.msra.mxu0 0.0
        %427 = vmatprep.subr.mxu0 0.0
        %428 = vmatpush1.msra.mxu0 0.0
        %429 = vmatprep.subr.mxu0 0.0
        %430 = vmatpush1.msra.mxu0 0.0
        %431 = vmatprep.subr.mxu0 0.0
        %432 = vmatpush1.msra.mxu0 0.0
        %433 = vmatprep.subr.mxu0 0.0
        %434 = vmatpush1.msra.mxu0 0.0
        %435 = vmatprep.subr.mxu0 0.0
        %436 = vmatpush1.msra.mxu0 0.0
        %437 = vmatprep.subr.mxu0 0.0
        %438 = vmatpush1.msra.mxu0 0.0
        %439 = vmatprep.subr.mxu0 0.0
        %440 = vmatpush1.msra.mxu0 0.0
        %441 = vmatprep.subr.mxu0 0.0
        %442 = vmatpush1.msra.mxu0 0.0
        %443 = vmatprep.subr.mxu0 0.0
        %444 = vmatpush1.msra.mxu0 0.0
        %445 = vmatprep.subr.mxu0 0.0
        %446 = vmatpush1.msra.mxu0 0.0
        %447 = vmatprep.subr.mxu0 0.0
        %448 = vmatpush1.msra.mxu0 0.0
        %449 = vmatprep.subr.mxu0 0.0
        %450 = vmatpush1.msra.mxu0 0.0
        %451 = vmatprep.subr.mxu0 0.0
        %452 = vmatpush1.msra.mxu0 0.0
        %453 = vmatprep.subr.mxu0 0.0
        %454 = vmatpush1.msra.mxu0 0.0
        %455 = vmatprep.subr.mxu0 0.0
        %456 = vmatpush1.msra.mxu0 0.0
        %457 = vmatprep.subr.mxu0 0.0
        %458 = vmatpush1.msra.mxu0 0.0
        %459 = vmatprep.subr.mxu0 0.0
        %460 = vmatpush1.msra.mxu0 0.0
        %461 = vmatprep.subr.mxu0 0.0
        %462 = vmatpush1.msra.mxu0 0.0
        %463 = vmatprep.subr.mxu0 0.0
        %464 = vmatpush1.msra.mxu0 0.0
        %465 = vmatprep.subr.mxu0 0.0
        %466 = vmatpush1.msra.mxu0 0.0
        %467 = vmatprep.subr.mxu0 0.0
        %468 = vmatpush1.msra.mxu0 0.0
        %469 = vmatprep.subr.mxu0 0.0
        %470 = vmatpush1.msra.mxu0 0.0
        %471 = vmatprep.subr.mxu0 0.0
        %472 = vmatpush1.msra.mxu0 0.0
        %473 = vmatprep.subr.mxu0 0.0
        %474 = vmatpush1.msra.mxu0 0.0
        %475 = vmatprep.subr.mxu0 0.0
        %476 = vmatpush1.msra.mxu0 0.0
        %477 = vmatprep.subr.mxu0 0.0
        %478 = vmatpush1.msra.mxu0 0.0
        %479 = vmatprep.subr.mxu0 0.0
        %480 = vmatpush1.msra.mxu0 0.0
        %481 = vmatprep.subr.mxu0 0.0
        %482 = vmatpush1.msra.mxu0 0.0
        %483 = vmatprep.subr.mxu0 0.0
        %484 = vmatpush1.msra.mxu0 0.0
        %485 = vmatprep.mubr.f32.mxu0 0.0
        %486 = vmatmul.mubr.f32.gmra.mrb[0].mxu0 %v419
        %v487 = vpop.f32.mrb[0].mxu0
        %v488 = vadd.f32 0.0, %v487
        %v489 = vpop.f32.mrb[0].mxu0
        %490 = vdwg.mxu0
        %v491 = vld [vmem:[%s7] sm:$0xf]
        %v492 = vld [vmem:[%s8] sm:$0xf]
        %v493 = vld [vmem:[%s4] sm:$0x1]
        %495 = vset.pattern.permute.xlu0 0
        %496 = vperm.xlu0 %495, %v492
        %v497 = vpop.permute.xlu0 %496
        %v500 = vlaneseq
        %v501 = vshrl.u32 %v500, 7
        %v502 = vsub.s32 0, %v501
        %v503 = vrot.slane %v493, %v502
        %v505 = vmul.f32 %v497, %v503
        %vm506 = vcmask 64512
        %v508 = vsel %vm506, %v491, 0
        %510 = vmatprep.subr.mxu0 0.0
        %511 = vmatpush1.msra.mxu0 %v488
        %512 = vmatprep.subr.mxu0 0.0
        %513 = vmatpush1.msra.mxu0 0.0
        %514 = vmatprep.subr.mxu0 0.0
        %515 = vmatpush1.msra.mxu0 0.0
        %516 = vmatprep.subr.mxu0 0.0
        %517 = vmatpush1.msra.mxu0 0.0
        %518 = vmatprep.subr.mxu0 0.0
        %519 = vmatpush1.msra.mxu0 0.0
        %520 = vmatprep.subr.mxu0 0.0
        %521 = vmatpush1.msra.mxu0 0.0
        %522 = vmatprep.subr.mxu0 0.0
        %523 = vmatpush1.msra.mxu0 0.0
        %524 = vmatprep.subr.mxu0 0.0
        %525 = vmatpush1.msra.mxu0 0.0
        %526 = vmatprep.subr.mxu0 0.0
        %527 = vmatpush1.msra.mxu0 0.0
        %528 = vmatprep.subr.mxu0 0.0
        %529 = vmatpush1.msra.mxu0 0.0
        %530 = vmatprep.subr.mxu0 0.0
        %531 = vmatpush1.msra.mxu0 0.0
        %532 = vmatprep.subr.mxu0 0.0
        %533 = vmatpush1.msra.mxu0 0.0
        %534 = vmatprep.subr.mxu0 0.0
        %535 = vmatpush1.msra.mxu0 0.0
        %536 = vmatprep.subr.mxu0 0.0
        %537 = vmatpush1.msra.mxu0 0.0
        %538 = vmatprep.subr.mxu0 0.0
        %539 = vmatpush1.msra.mxu0 0.0
        %540 = vmatprep.subr.mxu0 0.0
        %541 = vmatpush1.msra.mxu0 0.0
        %542 = vmatprep.subr.mxu0 0.0
        %543 = vmatpush1.msra.mxu0 0.0
        %544 = vmatprep.subr.mxu0 0.0
        %545 = vmatpush1.msra.mxu0 0.0
        %546 = vmatprep.subr.mxu0 0.0
        %547 = vmatpush1.msra.mxu0 0.0
        %548 = vmatprep.subr.mxu0 0.0
        %549 = vmatpush1.msra.mxu0 0.0
        %550 = vmatprep.subr.mxu0 0.0
        %551 = vmatpush1.msra.mxu0 0.0
        %552 = vmatprep.subr.mxu0 0.0
        %553 = vmatpush1.msra.mxu0 0.0
        %554 = vmatprep.subr.mxu0 0.0
        %555 = vmatpush1.msra.mxu0 0.0
        %556 = vmatprep.subr.mxu0 0.0
        %557 = vmatpush1.msra.mxu0 0.0
        %558 = vmatprep.subr.mxu0 0.0
        %559 = vmatpush1.msra.mxu0 0.0
        %560 = vmatprep.subr.mxu0 0.0
        %561 = vmatpush1.msra.mxu0 0.0
        %562 = vmatprep.subr.mxu0 0.0
        %563 = vmatpush1.msra.mxu0 0.0
        %564 = vmatprep.subr.mxu0 0.0
        %565 = vmatpush1.msra.mxu0 0.0
        %566 = vmatprep.subr.mxu0 0.0
        %567 = vmatpush1.msra.mxu0 0.0
        %568 = vmatprep.subr.mxu0 0.0
        %569 = vmatpush1.msra.mxu0 0.0
        %570 = vmatprep.subr.mxu0 0.0
        %571 = vmatpush1.msra.mxu0 0.0
        %572 = vmatprep.subr.mxu0 0.0
        %573 = vmatpush1.msra.mxu0 0.0
        %574 = vmatprep.mubr.f32.mxu0 0.0
        %575 = vmatmul.mubr.f32.gmra.mrb[0].mxu0 %v508
        %v576 = vpop.f32.mrb[0].mxu0
        %v577 = vadd.f32 %v505, %v576
        %v578 = vpop.f32.mrb[0].mxu0
        %579 = vdwg.mxu0
        %vm580 = vcmask 68608
        %581 = vst.msk [vmem:[#allocation2] sm:$0xf] %vm580, %v577
      $region60: #{fine_registration_forward.1} parent=55 // pred_fallthru
        _
      %v582 = vld [vmem:[%s390] sm:$0xff]
      %v583 = vld [vmem:[%s390 + $0x8] sm:$0xff]
      %v584 = vld [vmem:[%s390 + $0x10] sm:$0xff]
      %v585 = vld [vmem:[%s390 + $0x18] sm:$0xff]
      %v586 = vld [vmem:[%s390 + $0x20] sm:$0xf]
      %v587 = vld [vmem:[%s5] sm:$0xff]
      %v588 = vld [vmem:[%s5 + $0x8] sm:$0xff]
      %v589 = vld [vmem:[%s5 + $0x10] sm:$0xff]
      %v590 = vld [vmem:[%s5 + $0x18] sm:$0x7]
      %v591 = vld [vmem:[%s6] sm:$0xff]
      %v592 = vld [vmem:[%s6 + $0x8] sm:$0xff]
      %v593 = vld [vmem:[%s6 + $0x10] sm:$0xff]
      %v594 = vld [vmem:[%s6 + $0x18] sm:$0x7]
      %596 = vset.pattern.permute.xlu0 0
      %597 = vperm.xlu0 %596, %v591
      %v598 = vpop.permute.xlu0 %597
      %601 = vset.pattern.permute.xlu0 0
      %602 = vperm.xlu0 %601, %v592
      %v603 = vpop.permute.xlu0 %602
      %606 = vset.pattern.permute.xlu0 0
      %607 = vperm.xlu0 %606, %v593
      %v608 = vpop.permute.xlu0 %607
      %611 = vset.pattern.permute.xlu0 0
      %612 = vperm.xlu0 %611, %v594
      %v613 = vpop.permute.xlu0 %612
      %vm615 = vcmask 293888
      %v617 = vsel %vm615, %v587, 0
      %v620 = vsel %vm615, %v588, 0
      %v623 = vsel %vm615, %v589, 0
      %v626 = vsel %vm615, %v590, 0
      %vm628 = vcmask 1043456
      %v630 = vsel %vm628, %v586, 0
      %632 = vmatprep.subr.mxu0 0.0
      %633 = vmatpush1.msra.mxu0 %v582
      %634 = vmatprep.subr.mxu0 0.0
      %635 = vmatpush1.msra.mxu0 %v583
      %636 = vmatprep.subr.mxu0 0.0
      %637 = vmatpush1.msra.mxu0 %v584
      %638 = vmatprep.subr.mxu0 0.0
      %639 = vmatpush1.msra.mxu0 %v585
      %640 = vmatprep.subr.mxu0 0.0
      %641 = vmatpush1.msra.mxu0 %v630
      %642 = vmatprep.subr.mxu0 0.0
      %643 = vmatpush1.msra.mxu0 0.0
      %644 = vmatprep.subr.mxu0 0.0
      %645 = vmatpush1.msra.mxu0 0.0
      %646 = vmatprep.subr.mxu0 0.0
      %647 = vmatpush1.msra.mxu0 0.0
      %648 = vmatprep.subr.mxu0 0.0
      %649 = vmatpush1.msra.mxu0 0.0
      %650 = vmatprep.subr.mxu0 0.0
      %651 = vmatpush1.msra.mxu0 0.0
      %652 = vmatprep.subr.mxu0 0.0
      %653 = vmatpush1.msra.mxu0 0.0
      %654 = vmatprep.subr.mxu0 0.0
      %655 = vmatpush1.msra.mxu0 0.0
      %656 = vmatprep.subr.mxu0 0.0
      %657 = vmatpush1.msra.mxu0 0.0
      %658 = vmatprep.subr.mxu0 0.0
      %659 = vmatpush1.msra.mxu0 0.0
      %660 = vmatprep.subr.mxu0 0.0
      %661 = vmatpush1.msra.mxu0 0.0
      %662 = vmatprep.subr.mxu0 0.0
      %663 = vmatpush1.msra.mxu0 0.0
      %664 = vmatprep.subr.mxu0 0.0
      %665 = vmatpush1.msra.mxu0 0.0
      %666 = vmatprep.subr.mxu0 0.0
      %667 = vmatpush1.msra.mxu0 0.0
      %668 = vmatprep.subr.mxu0 0.0
      %669 = vmatpush1.msra.mxu0 0.0
      %670 = vmatprep.subr.mxu0 0.0
      %671 = vmatpush1.msra.mxu0 0.0
      %672 = vmatprep.subr.mxu0 0.0
      %673 = vmatpush1.msra.mxu0 0.0
      %674 = vmatprep.subr.mxu0 0.0
      %675 = vmatpush1.msra.mxu0 0.0
      %676 = vmatprep.subr.mxu0 0.0
      %677 = vmatpush1.msra.mxu0 0.0
      %678 = vmatprep.subr.mxu0 0.0
      %679 = vmatpush1.msra.mxu0 0.0
      %680 = vmatprep.subr.mxu0 0.0
      %681 = vmatpush1.msra.mxu0 0.0
      %682 = vmatprep.subr.mxu0 0.0
      %683 = vmatpush1.msra.mxu0 0.0
      %684 = vmatprep.subr.mxu0 0.0
      %685 = vmatpush1.msra.mxu0 0.0
      %686 = vmatprep.subr.mxu0 0.0
      %687 = vmatpush1.msra.mxu0 0.0
      %688 = vmatprep.subr.mxu0 0.0
      %689 = vmatpush1.msra.mxu0 0.0
      %690 = vmatprep.subr.mxu0 0.0
      %691 = vmatpush1.msra.mxu0 0.0
      %692 = vmatprep.subr.mxu0 0.0
      %693 = vmatpush1.msra.mxu0 0.0
      %694 = vmatprep.subr.mxu0 0.0
      %695 = vmatpush1.msra.mxu0 0.0
      %696 = vmatprep.mubr.f32.mxu0 0.0
      %697 = vmatmul.mubr.f32.gmra.mrb[0].mxu0 %v617
      %v698 = vpop.f32.mrb[0].mxu0
      %v699 = vadd.f32 %v598, %v698
      %v700 = vpop.f32.mrb[0].mxu0
      %701 = vmatprep.mubr.f32.mxu0 0.0
      %702 = vmatmul.mubr.f32.gmra.mrb[0].mxu0 %v620
      %v703 = vpop.f32.mrb[0].mxu0
      %v704 = vadd.f32 %v603, %v703
      %v705 = vpop.f32.mrb[0].mxu0
      %706 = vmatprep.mubr.f32.mxu0 0.0
      %707 = vmatmul.mubr.f32.gmra.mrb[0].mxu0 %v623
      %v708 = vpop.f32.mrb[0].mxu0
      %v709 = vadd.f32 %v608, %v708
      %v710 = vpop.f32.mrb[0].mxu0
      %711 = vmatprep.mubr.f32.mxu0 0.0
      %712 = vmatmul.mubr.f32.gmra.mrb[0].mxu0 %v626
      %v713 = vpop.f32.mrb[0].mxu0
      %v714 = vadd.f32 %v613, %v713
      %v715 = vpop.f32.mrb[0].mxu0
      %716 = vdwg.mxu0
      %v717 = vld [vmem:[%s398] sm:$0xff]
      %v718 = vld [vmem:[%s398 + $0x8] sm:$0xff]
      %v719 = vld [vmem:[%s398 + $0x10] sm:$0xff]
      %v720 = vld [vmem:[%s398 + $0x18] sm:$0x7]
      %v721 = vmul.f32 %v699, %v717
      %v722 = vmul.f32 %v704, %v718
      %v723 = vmul.f32 %v709, %v719
      %v724 = vmul.f32 %v714, %v720
      %vm725 = vcmask 523264
      %v726 = vsel %vm725, %v721, 0.0
      %v727 = vsel %vm725, %v722, 0.0
      %v728 = vadd.f32 %v726, %v727
      %v729 = vsel %vm725, %v723, 0.0
      %v730 = vadd.f32 %v728, %v729
      %vm731 = vcmask 518144
      %v732 = vsel %vm731, %v724, 0.0
      %v733 = vadd.f32 %v730, %v732
      %v734 = vrot.slane %v733, 4
      %v735 = vadd.f32 %v733, %v734
      %v736 = vrot.slane %v735, 2
      %v737 = vadd.f32 %v735, %v736
      %v738 = vrot.slane %v737, 1
      %v739 = vadd.f32 %v737, %v738
      %s740 = scalar_lea.vmem %s398, 32
      %v741 = vld [vmem:[%s740] sm:$0xff]
      %v742 = vld [vmem:[%s740 + $0x8] sm:$0xff]
      %v743 = vld [vmem:[%s740 + $0x10] sm:$0xff]
      %v744 = vld [vmem:[%s740 + $0x18] sm:$0x7]
      %v745 = vmul.f32 %v699, %v741
      %v746 = vmul.f32 %v704, %v742
      %v747 = vmul.f32 %v709, %v743
      %v748 = vmul.f32 %v714, %v744
      %v749 = vsel %vm725, %v745, 0.0
      %v750 = vsel %vm725, %v746, 0.0
      %v751 = vadd.f32 %v749, %v750
      %v752 = vsel %vm725, %v747, 0.0
      %v753 = vadd.f32 %v751, %v752
      %v754 = vsel %vm731, %v748, 0.0
      %v755 = vadd.f32 %v753, %v754
      %v756 = vrot.slane %v755, 4
      %v757 = vadd.f32 %v755, %v756
      %v758 = vrot.slane %v757, 2
      %v759 = vadd.f32 %v757, %v758
      %v760 = vrot.slane %v759, 1
      %v761 = vadd.f32 %v759, %v760
      %vm762 = vcmp.gt.f32.partialorder %v761, %v739
      %v763 = vsel %vm762, %v761, %v739
      %v764 = vsel %vm762, 1, 0
      %s765 = scalar_lea.vmem %s398, 64
      %v766 = vld [vmem:[%s765] sm:$0xff]
      %v767 = vld [vmem:[%s765 + $0x8] sm:$0xff]
      %v768 = vld [vmem:[%s765 + $0x10] sm:$0xff]
      %v769 = vld [vmem:[%s765 + $0x18] sm:$0x7]
      %v770 = vmul.f32 %v699, %v766
      %v771 = vmul.f32 %v704, %v767
      %v772 = vmul.f32 %v709, %v768
      %v773 = vmul.f32 %v714, %v769
      %v774 = vsel %vm725, %v770, 0.0
      %v775 = vsel %vm725, %v771, 0.0
      %v776 = vadd.f32 %v774, %v775
      %v777 = vsel %vm725, %v772, 0.0
      %v778 = vadd.f32 %v776, %v777
      %v779 = vsel %vm731, %v773, 0.0
      %v780 = vadd.f32 %v778, %v779
      %v781 = vrot.slane %v780, 4
      %v782 = vadd.f32 %v780, %v781
      %v783 = vrot.slane %v782, 2
      %v784 = vadd.f32 %v782, %v783
      %v785 = vrot.slane %v784, 1
      %v786 = vadd.f32 %v784, %v785
      %vm787 = vcmp.gt.f32.partialorder %v786, %v763
      %v788 = vsel %vm787, %v786, %v763
      %v789 = vsel %vm787, 2, %v764
      %s790 = scalar_lea.vmem %s398, 96
      %v791 = vld [vmem:[%s790] sm:$0xff]
      %v792 = vld [vmem:[%s790 + $0x8] sm:$0xff]
      %v793 = vld [vmem:[%s790 + $0x10] sm:$0xff]
      %v794 = vld [vmem:[%s790 + $0x18] sm:$0x7]
      %v795 = vmul.f32 %v699, %v791
      %v796 = vmul.f32 %v704, %v792
      %v797 = vmul.f32 %v709, %v793
      %v798 = vmul.f32 %v714, %v794
      %v799 = vsel %vm725, %v795, 0.0
      %v800 = vsel %vm725, %v796, 0.0
      %v801 = vadd.f32 %v799, %v800
      %v802 = vsel %vm725, %v797, 0.0
      %v803 = vadd.f32 %v801, %v802
      %v804 = vsel %vm731, %v798, 0.0
      %v805 = vadd.f32 %v803, %v804
      %v806 = vrot.slane %v805, 4
      %v807 = vadd.f32 %v805, %v806
      %v808 = vrot.slane %v807, 2
      %v809 = vadd.f32 %v807, %v808
      %v810 = vrot.slane %v809, 1
      %v811 = vadd.f32 %v809, %v810
      %vm812 = vcmp.gt.f32.partialorder %v811, %v788
      %v813 = vsel %vm812, %v811, %v788
      %v814 = vsel %vm812, 3, %v789
      %s815 = scalar_lea.vmem %s398, 128
      %v816 = vld [vmem:[%s815] sm:$0xff]
      %v817 = vld [vmem:[%s815 + $0x8] sm:$0xff]
      %v818 = vld [vmem:[%s815 + $0x10] sm:$0xff]
      %v819 = vld [vmem:[%s815 + $0x18] sm:$0x7]
      %v820 = vmul.f32 %v699, %v816
      %v821 = vmul.f32 %v704, %v817
      %v822 = vmul.f32 %v709, %v818
      %v823 = vmul.f32 %v714, %v819
      %v824 = vsel %vm725, %v820, 0.0
      %v825 = vsel %vm725, %v821, 0.0
      %v826 = vadd.f32 %v824, %v825
      %v827 = vsel %vm725, %v822, 0.0
      %v828 = vadd.f32 %v826, %v827
      %v829 = vsel %vm731, %v823, 0.0
      %v830 = vadd.f32 %v828, %v829
      %v831 = vrot.slane %v830, 4
      %v832 = vadd.f32 %v830, %v831
      %v833 = vrot.slane %v832, 2
      %v834 = vadd.f32 %v832, %v833
      %v835 = vrot.slane %v834, 1
      %v836 = vadd.f32 %v834, %v835
      %vm837 = vcmp.gt.f32.partialorder %v836, %v813
      %v838 = vsel %vm837, %v836, %v813
      %v839 = vsel %vm837, 4, %v814
      %s840 = scalar_lea.vmem %s398, 160
      %v841 = vld [vmem:[%s840] sm:$0xff]
      %v842 = vld [vmem:[%s840 + $0x8] sm:$0xff]
      %v843 = vld [vmem:[%s840 + $0x10] sm:$0xff]
      %v844 = vld [vmem:[%s840 + $0x18] sm:$0x7]
      %v845 = vmul.f32 %v699, %v841
      %v846 = vmul.f32 %v704, %v842
      %v847 = vmul.f32 %v709, %v843
      %v848 = vmul.f32 %v714, %v844
      %v849 = vsel %vm725, %v845, 0.0
      %v850 = vsel %vm725, %v846, 0.0
      %v851 = vadd.f32 %v849, %v850
      %v852 = vsel %vm725, %v847, 0.0
      %v853 = vadd.f32 %v851, %v852
      %v854 = vsel %vm731, %v848, 0.0
      %v855 = vadd.f32 %v853, %v854
      %v856 = vrot.slane %v855, 4
      %v857 = vadd.f32 %v855, %v856
      %v858 = vrot.slane %v857, 2
      %v859 = vadd.f32 %v857, %v858
      %v860 = vrot.slane %v859, 1
      %v861 = vadd.f32 %v859, %v860
      %vm862 = vcmp.gt.f32.partialorder %v861, %v838
      %v863 = vsel %vm862, %v861, %v838
      %v864 = vsel %vm862, 5, %v839
      %s865 = scalar_lea.vmem %s398, 192
      %v866 = vld [vmem:[%s865] sm:$0xff]
      %v867 = vld [vmem:[%s865 + $0x8] sm:$0xff]
      %v868 = vld [vmem:[%s865 + $0x10] sm:$0xff]
      %v869 = vld [vmem:[%s865 + $0x18] sm:$0x7]
      %v870 = vmul.f32 %v699, %v866
      %v871 = vmul.f32 %v704, %v867
      %v872 = vmul.f32 %v709, %v868
      %v873 = vmul.f32 %v714, %v869
      %v874 = vsel %vm725, %v870, 0.0
      %v875 = vsel %vm725, %v871, 0.0
      %v876 = vadd.f32 %v874, %v875
      %v877 = vsel %vm725, %v872, 0.0
      %v878 = vadd.f32 %v876, %v877
      %v879 = vsel %vm731, %v873, 0.0
      %v880 = vadd.f32 %v878, %v879
      %v881 = vrot.slane %v880, 4
      %v882 = vadd.f32 %v880, %v881
      %v883 = vrot.slane %v882, 2
      %v884 = vadd.f32 %v882, %v883
      %v885 = vrot.slane %v884, 1
      %v886 = vadd.f32 %v884, %v885
      %vm887 = vcmp.gt.f32.partialorder %v886, %v863
      %v888 = vsel %vm887, %v886, %v863
      %v889 = vsel %vm887, 6, %v864
      %s890 = scalar_lea.vmem %s398, 224
      %v891 = vld [vmem:[%s890] sm:$0xff]
      %v892 = vld [vmem:[%s890 + $0x8] sm:$0xff]
      %v893 = vld [vmem:[%s890 + $0x10] sm:$0xff]
      %v894 = vld [vmem:[%s890 + $0x18] sm:$0x7]
      %v895 = vmul.f32 %v699, %v891
      %v896 = vmul.f32 %v704, %v892
      %v897 = vmul.f32 %v709, %v893
      %v898 = vmul.f32 %v714, %v894
      %v899 = vsel %vm725, %v895, 0.0
      %v900 = vsel %vm725, %v896, 0.0
      %v901 = vadd.f32 %v899, %v900
      %v902 = vsel %vm725, %v897, 0.0
      %v903 = vadd.f32 %v901, %v902
      %v904 = vsel %vm731, %v898, 0.0
      %v905 = vadd.f32 %v903, %v904
      %v906 = vrot.slane %v905, 4
      %v907 = vadd.f32 %v905, %v906
      %v908 = vrot.slane %v907, 2
      %v909 = vadd.f32 %v907, %v908
      %v910 = vrot.slane %v909, 1
      %v911 = vadd.f32 %v909, %v910
      %vm912 = vcmp.gt.f32.partialorder %v911, %v888
      %v913 = vsel %vm912, %v911, %v888
      %v914 = vsel %vm912, 7, %v889
      %s915 = scalar_lea.vmem %s398, 256
      %v916 = vld [vmem:[%s915] sm:$0xff]
      %v917 = vld [vmem:[%s915 + $0x8] sm:$0xff]
      %v918 = vld [vmem:[%s915 + $0x10] sm:$0xff]
      %v919 = vld [vmem:[%s915 + $0x18] sm:$0x7]
      %v920 = vmul.f32 %v699, %v916
      %v921 = vmul.f32 %v704, %v917
      %v922 = vmul.f32 %v709, %v918
      %v923 = vmul.f32 %v714, %v919
      %v924 = vsel %vm725, %v920, 0.0
      %v925 = vsel %vm725, %v921, 0.0
      %v926 = vadd.f32 %v924, %v925
      %v927 = vsel %vm725, %v922, 0.0
      %v928 = vadd.f32 %v926, %v927
      %v929 = vsel %vm731, %v923, 0.0
      %v930 = vadd.f32 %v928, %v929
      %v931 = vrot.slane %v930, 4
      %v932 = vadd.f32 %v930, %v931
      %v933 = vrot.slane %v932, 2
      %v934 = vadd.f32 %v932, %v933
      %v935 = vrot.slane %v934, 1
      %v936 = vadd.f32 %v934, %v935
      %vm937 = vcmp.gt.f32.partialorder %v936, %v913
      %v938 = vsel %vm937, 8, %v914
      %v939 = vld [vmem:[#allocation2] sm:$0xf]
      %vm940 = vcmp.eq.s32.totalorder %v938, 0
      %v941 = vsel %vm940, 1, 0
      %vm942 = vcmp.eq.s32.totalorder %v941, 1
      %944 = vset.pattern.permute.xlu0 0
      %945 = vperm.xlu0 %944, %v939
      %v946 = vpop.permute.xlu0 %945
      %v948 = vsel %vm942, %v946, 0.0
      %vm949 = vcmp.eq.s32.totalorder %v938, 1
      %v950 = vsel %vm949, 1, 0
      %vm951 = vcmp.eq.s32.totalorder %v950, 1
      %952 = vset.pattern.permute.xlu0 1
      %953 = vperm.xlu0 %952, %v939
      %v954 = vpop.permute.xlu0 %953
      %v956 = vsel %vm951, %v954, %v948
      %vm957 = vcmp.eq.s32.totalorder %v938, 2
      %v958 = vsel %vm957, 1, 0
      %vm959 = vcmp.eq.s32.totalorder %v958, 1
      %960 = vset.pattern.permute.xlu0 2
      %961 = vperm.xlu0 %960, %v939
      %v962 = vpop.permute.xlu0 %961
      %v964 = vsel %vm959, %v962, %v956
      %vm965 = vcmp.eq.s32.totalorder %v938, 3
      %v966 = vsel %vm965, 1, 0
      %vm967 = vcmp.eq.s32.totalorder %v966, 1
      %968 = vset.pattern.permute.xlu0 3
      %969 = vperm.xlu0 %968, %v939
      %v970 = vpop.permute.xlu0 %969
      %v972 = vsel %vm967, %v970, %v964
      %vm973 = vcmp.eq.s32.totalorder %v938, 4
      %v974 = vsel %vm973, 1, 0
      %vm975 = vcmp.eq.s32.totalorder %v974, 1
      %976 = vset.pattern.permute.xlu0 4
      %977 = vperm.xlu0 %976, %v939
      %v978 = vpop.permute.xlu0 %977
      %v980 = vsel %vm975, %v978, %v972
      %vm981 = vcmp.eq.s32.totalorder %v938, 5
      %v982 = vsel %vm981, 1, 0
      %vm983 = vcmp.eq.s32.totalorder %v982, 1
      %984 = vset.pattern.permute.xlu0 5
      %985 = vperm.xlu0 %984, %v939
      %v986 = vpop.permute.xlu0 %985
      %v988 = vsel %vm983, %v986, %v980
      %vm989 = vcmp.eq.s32.totalorder %v938, 6
      %v990 = vsel %vm989, 1, 0
      %vm991 = vcmp.eq.s32.totalorder %v990, 1
      %992 = vset.pattern.permute.xlu0 6
      %993 = vperm.xlu0 %992, %v939
      %v994 = vpop.permute.xlu0 %993
      %v996 = vsel %vm991, %v994, %v988
      %vm997 = vcmp.eq.s32.totalorder %v938, 7
      %v998 = vsel %vm997, 1, 0
      %vm999 = vcmp.eq.s32.totalorder %v998, 1
      %1000 = vset.pattern.permute.xlu0 7
      %1001 = vperm.xlu0 %1000, %v939
      %v1002 = vpop.permute.xlu0 %1001
      %v1004 = vsel %vm999, %v1002, %v996
      %vm1005 = vcmp.eq.s32.totalorder %v938, 8
      %v1006 = vsel %vm1005, 1, 0
      %vm1007 = vcmp.eq.s32.totalorder %v1006, 1
      %1008 = vset.pattern.permute.xlu0 8
      %1009 = vperm.xlu0 %1008, %v939
      %v1010 = vpop.permute.xlu0 %1009
      %v1012 = vsel %vm1007, %v1010, %v1004
      %vm1013 = vcmask 519168
      %1014 = vst.msk [vmem:[%s409] sm:$0xf] %vm1013, %v1012
      %p1015 = scmp.lt.s32.totalorder %s24, 1
      %s1016 = scalar_select %p1015, %s24, 1
      %p1017 = scmp.lt.s32.totalorder %s25, 0
      %s1018 = scalar_select %p1017, %s25, 0
      %s1019 = sadd.s32 %s1018, %s1016
      %s1020 = smul.addr %s1019, 4
      %s1021 = scalar_lea.vmem %s9, %s1020
      // Predicated region
      $region61: #{fine_registration_forward.1} parent=55 // pred_check
        %p1022 = pneg %p260
      $region62: #{fine_registration_forward.1} parent=55 // pred_check_branch
        %1024 = sbr.rel (%p1022) target = $region64
      $region63: #{fine_registration_forward.1} parent=55 // pred_region
        _
      $region64: #{fine_registration_forward.1} parent=55 // pred_fallthru
        _
    $region56: #{fine_registration_forward.1} parent=5 // pred_fallthru
      _
    %p1025 = scmp.le.s32.totalorder 2, %s15
    // Predicated region
    $region65: #{fine_registration_forward.1} parent=5 // pred_check
      %p1026 = pneg %p1025
    $region66: #{fine_registration_forward.1} parent=5 // pred_check_branch
      %1028 = sbr.rel (%p1026) target = $region68
    $region67: #{fine_registration_forward.1} parent=5 // pred_region
      %s1029 = ssub.s32 %s15, 2
      // Predicated region
      $region69: #{fine_registration_forward.1} parent=67 // pred_check
        %p1030 = pneg %p266
      $region70: #{fine_registration_forward.1} parent=67 // pred_check_branch
        %1032 = sbr.rel (%p1030) target = $region72
      $region71: #{fine_registration_forward.1} parent=67 // pred_region
        %p1033 = scmp.lt.s32.totalorder %s26, 1
        %s1034 = scalar_select %p1033, %s26, 1
        %p1035 = scmp.lt.s32.totalorder %s27, 0
        %s1036 = scalar_select %p1035, %s27, 0
        %s1037 = sadd.s32 %s1036, %s1034
        %s1038 = smul.addr %s1037, 4
        %s1039 = scalar_lea.vmem %s9, %s1038
      $region72: #{fine_registration_forward.1} parent=67 // pred_fallthru
        _
    $region68: #{fine_registration_forward.1} parent=5 // pred_fallthru
      _
  $region6: #{fine_registration_forward.1} parent=0 // loop_footer
    %s19 = sadd.s32 1, %s15
  $region7: #{fine_registration_forward.1} parent=0 // loop_footer_branch
    %14 = sbr.rel target = $region3
  $region8: #{fine_registration_forward.1} parent=0 // loop_exit
    _

</llo_original>
